<compile_context>
chip_gen: v7x
topology: tpu7x:2x2x1
jax: 0.10.0
libtpu: 0.0.40
codegen_flags: <defaults>
</compile_context>

<pallas_src>
import jax
import jax.numpy as jnp
from jax import lax
from jax.experimental import pallas as pl
from jax.experimental.pallas import tpu as pltpu


def _lstm_kernel(xw0_ref, w0_ref, w1_ref, b1_ref, out_ref):
    """Full 2-layer LSTM recurrence over T timesteps in one invocation.

    xw0_ref : (T*B, 4H) f32   precomputed x_t @ Wih0^T + b0, gate order (o,i,f,g),
                              stored sublane-dense (row t*B + b).
    w0_ref  : (4H, 4H)  bf16  Whh0^T zero-padded along K (only rows [0,H) nonzero)
    w1_ref  : (4H, 4H)  bf16  packed layer-1 weight: rows [0,H)=Wih1^T,
                              rows [H,2H)=Whh1^T, rows [2H,3H)=0, rows [3H,4H)=Whh1^T
                              (duplicate makes the packed-LHS roll direction-free)
    b1_ref  : (1, 4H)   f32   combined layer-1 bias (b_ih + b_hh), gate-permuted
    out_ref : (B, 4H)   f32   final layer-1 hidden state (real h in lanes [0, H))
    """
    TB, G = xw0_ref.shape
    H = G // 4
    B = out_ref.shape[0]
    T = TB // B

    # Loop-invariant values hoisted out of the recurrence.  With bf16 weights
    # this is ~16 vregs live, well under the register file.
    w0 = w0_ref[...]                                   # (G, G) bf16
    w1 = w1_ref[...]                                   # (G, G) bf16
    b1 = jnp.broadcast_to(b1_ref[...], (B, G))
    lane = lax.broadcasted_iota(jnp.int32, (B, G), 1)
    g_mask = lane >= 3 * H      # tanh ('g') block; kernel gate order is (o, i, f, g)
    h_mask = lane < H           # real-hidden lanes

    def cell_update(gates, c_full):
        # One EUP transcendental per (B, 4H) tile: sigmoid(x) = 0.5*(1 + tanh(x/2)).
        # The mul/add fixup rides the VPU, which has slack on the serial chain.
        y = jnp.tanh(jnp.where(g_mask, gates, 0.5 * gates))
        act = jnp.where(g_mask, y, 0.5 * y + 0.5)
        # Align gates to lanes [0, H) with XLU rolls.  NOTE: this is only
        # roll-direction independent because _perm_gates lays the blocks out as
        # (o, i, f, g): roll(2H) puts f at block 0 (symmetric), and {roll(H),
        # roll(3H)} put {i, g} at block 0 in some order, which only matters via
        # the commutative product i*g.  Keep _perm_gates and this in sync.
        r1 = pltpu.roll(act, H, axis=1)
        r2 = pltpu.roll(act, 2 * H, axis=1)
        r3 = pltpu.roll(act, 3 * H, axis=1)
        c_new = r2 * c_full + r1 * r3          # lanes [0,H): f*c + i*g
        h_new = act * jnp.tanh(c_new)          # lanes [0,H): o*tanh(c_new)
        return h_new, c_new                    # other lanes: bounded garbage,
                                               # killed by zero bf16 weight rows.

    def step(t, carry):
        h0f, c0f, h1f, c1f = carry
        # Layer 0: input projection was hoisted; only the recurrent matmul.
        x0 = xw0_ref[pl.ds(pl.multiple_of(t * B, B), B), :]
        g0 = x0 + jnp.dot(h0f.astype(jnp.bfloat16), w0,
                          preferred_element_type=jnp.float32)
        h0f, c0f = cell_update(g0, c0f)
        # Layer 1: packed LHS, K = 4H.  lanes [0,H)=h0; one of {[H,2H),[3H,4H)}
        # holds h1 (whichever the roll direction picks -- the weight covers
        # both); all remaining lanes are exactly zero.
        h1_clean = jnp.where(h_mask, h1f, 0.0)
        x1 = jnp.where(h_mask, h0f, pltpu.roll(h1_clean, H, axis=1))
        g1 = jnp.dot(x1.astype(jnp.bfloat16), w1,
                     preferred_element_type=jnp.float32) + b1
        h1f, c1f = cell_update(g1, c1f)
        return h0f, c0f, h1f, c1f

    zeros = jnp.zeros((B, G), jnp.float32)
    _, _, h1f, _ = lax.fori_loop(0, T, step, (zeros, zeros, zeros, zeros),
                                 unroll=True)
    out_ref[...] = h1f


def _perm_gates(w):
    """Reorder the 4H gate axis from PyTorch (i, f, g, o) to kernel (o, i, f, g).

    Must stay consistent with the roll-based alignment in cell_update."""
    i, f, g, o = jnp.split(w, 4, axis=-1)
    return jnp.concatenate([o, i, f, g], axis=-1)


def lstm_forward(x, params):
    """x: [B, T, D_in] float32. Returns [B, num_classes] float32."""
    wih0, whh0, b0, wih1, whh1, b1, wfc, bfc = params
    B, T, D = x.shape
    H = whh0.shape[0]
    G = 4 * H
    hi = jax.lax.Precision.HIGHEST

    # Gate-permute parameters into the kernel-internal (o, i, f, g) layout.
    wih0p, whh0p, b0p = _perm_gates(wih0), _perm_gates(whh0), _perm_gates(b0)
    wih1p, whh1p, b1p = _perm_gates(wih1), _perm_gates(whh1), _perm_gates(b1)

    # Hoisted, time-parallel layer-0 input projection, stored sublane-dense:
    # (T*B, 4H) instead of a sublane-padded (T, B, 4H) block.
    xw0 = jnp.einsum('btd,dg->tbg', x, wih0p, precision=hi) + b0p
    xw0 = xw0.reshape(T * B, G)

    # Layer-0 recurrent weight, zero-padded along K so the hidden state stays
    # at full (B, 4H) lane width (real h in lanes [0, H)).  bf16 MXU operand;
    # the zero rows stay exactly 0.0 after the cast, so garbage lanes never leak.
    w0p = jnp.zeros((G, G), jnp.float32).at[:H, :].set(whh0p).astype(jnp.bfloat16)

    # Layer-1 packed weight (K halved: 8H -> 4H).  Whh1^T duplicated at rows
    # [H,2H) and [3H,4H): whichever block the in-kernel roll does NOT fill with
    # h1 multiplies exact zeros, so the result is roll-direction independent.
    w1p = (jnp.zeros((G, G), jnp.float32)
           .at[:H, :].set(wih1p)
           .at[H:2 * H, :].set(whh1p)
           .at[3 * H:, :].set(whh1p)
           .astype(jnp.bfloat16))

    grid_spec = pltpu.PrefetchScalarGridSpec(
        num_scalar_prefetch=0,
        grid=(1,),                                   # single step: loop is in-kernel
        in_specs=[
            pl.BlockSpec((T * B, G), lambda i: (0, 0)),   # all timesteps resident
            pl.BlockSpec((G, G), lambda i: (0, 0)),
            pl.BlockSpec((G, G), lambda i: (0, 0)),
            pl.BlockSpec((1, G), lambda i: (0, 0)),
        ],
        out_specs=pl.BlockSpec((B, G), lambda i: (0, 0)),  # lane-dense output
    )

    h1_full = pl.pallas_call(
        _lstm_kernel,
        out_shape=jax.ShapeDtypeStruct((B, G), jnp.float32),
        grid_spec=grid_spec,
        compiler_params=pltpu.CompilerParams(
            dimension_semantics=("arbitrary",)),
    )(xw0, w0p, w1p, b1p)

    # FC head in the wrapper (num_classes=1 would be a degenerate masked store
    # and a matvec tail inside the kernel).
    return jnp.dot(h1_full[:, :H], wfc, precision=hi) + bfc


def lstm_ref(x, params):
    """Pure-JAX f32 reference mirroring PyTorch nn.LSTM(batch_first) + Linear."""
    wih0, whh0, b0, wih1, whh1, b1, wfc, bfc = params
    B, T, _ = x.shape
    H = whh0.shape[0]

    def cell(x_in, h, c, wih, whh, b):
        gates = x_in @ wih + h @ whh + b
        i = jax.nn.sigmoid(gates[:, :H])
        f = jax.nn.sigmoid(gates[:, H:2 * H])
        g = jnp.tanh(gates[:, 2 * H:3 * H])
        o = jax.nn.sigmoid(gates[:, 3 * H:])
        c = f * c + i * g
        h = o * jnp.tanh(c)
        return h, c

    h0 = jnp.zeros((B, H), jnp.float32)
    c0 = jnp.zeros((B, H), jnp.float32)
    h1 = jnp.zeros((B, H), jnp.float32)
    c1 = jnp.zeros((B, H), jnp.float32)
    for t in range(T):
        h0, c0 = cell(x[:, t], h0, c0, wih0, whh0, b0)
        h1, c1 = cell(h0, h1, c1, wih1, whh1, b1)
    return h1 @ wfc + bfc


def init_params(key, input_size, hidden_size, num_classes):
    """Deterministic init; PyTorch-compatible shapes (weights stored transposed,
    gate order i, f, g, o along the 4H axis)."""
    H = hidden_size
    k = 1.0 / jnp.sqrt(jnp.float32(H))
    keys = jax.random.split(key, 8)
    u = lambda kk, shape: jax.random.uniform(kk, shape, jnp.float32, -k, k)
    wih0 = u(keys[0], (input_size, 4 * H))   # W_ih_l0^T
    whh0 = u(keys[1], (H, 4 * H))            # W_hh_l0^T
    b0 = u(keys[2], (1, 4 * H))              # b_ih_l0 + b_hh_l0 combined
    wih1 = u(keys[3], (H, 4 * H))            # W_ih_l1^T
    whh1 = u(keys[4], (H, 4 * H))            # W_hh_l1^T
    b1 = u(keys[5], (1, 4 * H))
    wfc = u(keys[6], (H, num_classes))       # fc.weight^T
    bfc = u(keys[7], (1, num_classes))
    return (wih0, whh0, b0, wih1, whh1, b1, wfc, bfc)


if __name__ == "__main__":
    B, T, D = 2, 8, 16          # batch, seq_len, input_size
    H, C = 32, 1                # hidden_size, num_classes (num_layers = 2)

    key = jax.random.PRNGKey(0)
    kx, kp = jax.random.split(key)
    x = jax.random.normal(kx, (B, T, D), jnp.float32)
    params = init_params(kp, D, H, C)

    out = jax.jit(lstm_forward)(x, params)
    out = jax.block_until_ready(out)

    ref = lstm_ref(x, params)
    assert out.shape == (B, C), out.shape
    # Tolerance relaxed vs. the f32-only version: the recurrent matmuls now use
    # bf16 MXU operands (f32 accumulation / elementwise), per the perf review.
    assert jnp.allclose(out, ref, atol=3e-2, rtol=3e-2), (out, ref)

    print("KERNEL_OK")
</pallas_src>

<mosaic_0001>
module attributes {stable_mosaic.version = 11 : i64} {
  func.func @_lstm_kernel(%arg0: i32, %arg1: memref<16x128xf32, #tpu.memory_space<vmem>>, %arg2: memref<128x128xbf16, #tpu.memory_space<vmem>>, %arg3: memref<128x128xbf16, #tpu.memory_space<vmem>>, %arg4: memref<1x128xf32, #tpu.memory_space<vmem>>, %arg5: memref<2x128xf32, #tpu.memory_space<vmem>>) attributes {dimension_semantics = [#tpu.dimension_semantics<arbitrary>], iteration_bounds = array<i64: 1>, scalar_prefetch = 0 : i64, scratch_operands = 0 : i64, tpu.core_type = #tpu.core_type<tc>, window_params = [{pipeline_mode = #tpu.pipeline_mode<synchronous>, transform_indices = @transform_0, window_bounds = array<i64: 16, 128>}, {pipeline_mode = #tpu.pipeline_mode<synchronous>, transform_indices = @transform_1, window_bounds = array<i64: 128, 128>}, {pipeline_mode = #tpu.pipeline_mode<synchronous>, transform_indices = @transform_2, window_bounds = array<i64: 128, 128>}, {pipeline_mode = #tpu.pipeline_mode<synchronous>, transform_indices = @transform_3, window_bounds = array<i64: 1, 128>}, {pipeline_mode = #tpu.pipeline_mode<synchronous>, transform_indices = @transform_4, window_bounds = array<i64: 2, 128>}]} {
    %c0 = arith.constant 0 : index
    %c0_0 = arith.constant 0 : index
    %0 = vector.load %arg2[%c0, %c0_0] : memref<128x128xbf16, #tpu.memory_space<vmem>>, vector<128x128xbf16>
    %c0_1 = arith.constant 0 : index
    %c0_2 = arith.constant 0 : index
    %1 = vector.load %arg3[%c0_1, %c0_2] : memref<128x128xbf16, #tpu.memory_space<vmem>>, vector<128x128xbf16>
    %c0_3 = arith.constant 0 : index
    %c0_4 = arith.constant 0 : index
    %2 = vector.load %arg4[%c0_3, %c0_4] : memref<1x128xf32, #tpu.memory_space<vmem>>, vector<1x128xf32>
    %3 = vector.shape_cast %2 : vector<1x128xf32> to vector<1x128xf32>
    %4 = vector.broadcast %3 : vector<1x128xf32> to vector<2x128xf32>
    %5 = tpu.iota {dimensions = array<i32: 1>} : vector<2x128xi32>
    %c96_i32 = arith.constant 96 : i32
    %6 = vector.broadcast %c96_i32 : i32 to vector<2x128xi32>
    %7 = arith.cmpi sge, %5, %6 : vector<2x128xi32>
    %c32_i32 = arith.constant 32 : i32
    %8 = vector.broadcast %c32_i32 : i32 to vector<2x128xi32>
    %9 = arith.cmpi slt, %5, %8 : vector<2x128xi32>
    %cst = arith.constant 0.000000e+00 : f32
    %10 = vector.broadcast %cst : f32 to vector<2x128xf32>
    %c0_i32 = arith.constant 0 : i32
    %c2_i32 = arith.constant 2 : i32
    %11 = arith.muli %c0_i32, %c2_i32 : i32
    %12 = tpu.assume_multiple %11, 2 : i32
    %13 = arith.index_cast %12 : i32 to index
    %c0_5 = arith.constant 0 : index
    %14 = vector.load %arg1[%13, %c0_5] : memref<16x128xf32, #tpu.memory_space<vmem>>, vector<2x128xf32>
    %15 = arith.truncf %10 : vector<2x128xf32> to vector<2x128xbf16>
    %cst_6 = arith.constant dense<0.000000e+00> : vector<2x128xf32>
    %16 = tpu.matmul %15, %0, %cst_6 {dimension_numbers = #tpu.dot_dimension_numbers<[1], [0], [0], [1], [0, 0, 1, 1], [], []>} : vector<2x128xbf16>, vector<128x128xbf16>, vector<2x128xf32> -> vector<2x128xf32>
    %17 = arith.addf %14, %16 : vector<2x128xf32>
    %cst_7 = arith.constant 5.000000e-01 : f32
    %18 = vector.broadcast %cst_7 : f32 to vector<2x128xf32>
    %19 = arith.mulf %18, %17 : vector<2x128xf32>
    %20 = arith.select %7, %17, %19 : vector<2x128xi1>, vector<2x128xf32>
    %21 = math.tanh %20 : vector<2x128xf32>
    %cst_8 = arith.constant 5.000000e-01 : f32
    %22 = vector.broadcast %cst_8 : f32 to vector<2x128xf32>
    %23 = arith.mulf %22, %21 : vector<2x128xf32>
    %cst_9 = arith.constant 5.000000e-01 : f32
    %24 = vector.broadcast %cst_9 : f32 to vector<2x128xf32>
    %25 = arith.addf %23, %24 : vector<2x128xf32>
    %26 = arith.select %7, %21, %25 : vector<2x128xi1>, vector<2x128xf32>
    %c32_i32_10 = arith.constant 32 : i32
    %27 = tpu.dynamic_rotate %26 by %c32_i32_10 dim 1 : vector<2x128xf32>, i32 -> vector<2x128xf32>
    %c64_i32 = arith.constant 64 : i32
    %28 = tpu.dynamic_rotate %26 by %c64_i32 dim 1 : vector<2x128xf32>, i32 -> vector<2x128xf32>
    %c96_i32_11 = arith.constant 96 : i32
    %29 = tpu.dynamic_rotate %26 by %c96_i32_11 dim 1 : vector<2x128xf32>, i32 -> vector<2x128xf32>
    %30 = arith.mulf %28, %10 : vector<2x128xf32>
    %31 = arith.mulf %27, %29 : vector<2x128xf32>
    %32 = arith.addf %30, %31 : vector<2x128xf32>
    %33 = math.tanh %32 : vector<2x128xf32>
    %34 = arith.mulf %26, %33 : vector<2x128xf32>
    %cst_12 = arith.constant 0.000000e+00 : f32
    %35 = vector.broadcast %cst_12 : f32 to vector<2x128xf32>
    %36 = arith.select %9, %10, %35 : vector<2x128xi1>, vector<2x128xf32>
    %c32_i32_13 = arith.constant 32 : i32
    %37 = tpu.dynamic_rotate %36 by %c32_i32_13 dim 1 : vector<2x128xf32>, i32 -> vector<2x128xf32>
    %38 = arith.select %9, %34, %37 : vector<2x128xi1>, vector<2x128xf32>
    %39 = arith.truncf %38 : vector<2x128xf32> to vector<2x128xbf16>
    %cst_14 = arith.constant dense<0.000000e+00> : vector<2x128xf32>
    %40 = tpu.matmul %39, %1, %cst_14 {dimension_numbers = #tpu.dot_dimension_numbers<[1], [0], [0], [1], [0, 0, 1, 1], [], []>} : vector<2x128xbf16>, vector<128x128xbf16>, vector<2x128xf32> -> vector<2x128xf32>
    %41 = arith.addf %40, %4 : vector<2x128xf32>
    %cst_15 = arith.constant 5.000000e-01 : f32
    %42 = vector.broadcast %cst_15 : f32 to vector<2x128xf32>
    %43 = arith.mulf %42, %41 : vector<2x128xf32>
    %44 = arith.select %7, %41, %43 : vector<2x128xi1>, vector<2x128xf32>
    %45 = math.tanh %44 : vector<2x128xf32>
    %cst_16 = arith.constant 5.000000e-01 : f32
    %46 = vector.broadcast %cst_16 : f32 to vector<2x128xf32>
    %47 = arith.mulf %46, %45 : vector<2x128xf32>
    %cst_17 = arith.constant 5.000000e-01 : f32
    %48 = vector.broadcast %cst_17 : f32 to vector<2x128xf32>
    %49 = arith.addf %47, %48 : vector<2x128xf32>
    %50 = arith.select %7, %45, %49 : vector<2x128xi1>, vector<2x128xf32>
    %c32_i32_18 = arith.constant 32 : i32
    %51 = tpu.dynamic_rotate %50 by %c32_i32_18 dim 1 : vector<2x128xf32>, i32 -> vector<2x128xf32>
    %c64_i32_19 = arith.constant 64 : i32
    %52 = tpu.dynamic_rotate %50 by %c64_i32_19 dim 1 : vector<2x128xf32>, i32 -> vector<2x128xf32>
    %c96_i32_20 = arith.constant 96 : i32
    %53 = tpu.dynamic_rotate %50 by %c96_i32_20 dim 1 : vector<2x128xf32>, i32 -> vector<2x128xf32>
    %54 = arith.mulf %52, %10 : vector<2x128xf32>
    %55 = arith.mulf %51, %53 : vector<2x128xf32>
    %56 = arith.addf %54, %55 : vector<2x128xf32>
    %57 = math.tanh %56 : vector<2x128xf32>
    %58 = arith.mulf %50, %57 : vector<2x128xf32>
    %c1_i32 = arith.constant 1 : i32
    %c2_i32_21 = arith.constant 2 : i32
    %59 = arith.muli %c1_i32, %c2_i32_21 : i32
    %60 = tpu.assume_multiple %59, 2 : i32
    %61 = arith.index_cast %60 : i32 to index
    %c0_22 = arith.constant 0 : index
    %62 = vector.load %arg1[%61, %c0_22] : memref<16x128xf32, #tpu.memory_space<vmem>>, vector<2x128xf32>
    %63 = arith.truncf %34 : vector<2x128xf32> to vector<2x128xbf16>
    %cst_23 = arith.constant dense<0.000000e+00> : vector<2x128xf32>
    %64 = tpu.matmul %63, %0, %cst_23 {dimension_numbers = #tpu.dot_dimension_numbers<[1], [0], [0], [1], [0, 0, 1, 1], [], []>} : vector<2x128xbf16>, vector<128x128xbf16>, vector<2x128xf32> -> vector<2x128xf32>
    %65 = arith.addf %62, %64 : vector<2x128xf32>
    %cst_24 = arith.constant 5.000000e-01 : f32
    %66 = vector.broadcast %cst_24 : f32 to vector<2x128xf32>
    %67 = arith.mulf %66, %65 : vector<2x128xf32>
    %68 = arith.select %7, %65, %67 : vector<2x128xi1>, vector<2x128xf32>
    %69 = math.tanh %68 : vector<2x128xf32>
    %cst_25 = arith.constant 5.000000e-01 : f32
    %70 = vector.broadcast %cst_25 : f32 to vector<2x128xf32>
    %71 = arith.mulf %70, %69 : vector<2x128xf32>
    %cst_26 = arith.constant 5.000000e-01 : f32
    %72 = vector.broadcast %cst_26 : f32 to vector<2x128xf32>
    %73 = arith.addf %71, %72 : vector<2x128xf32>
    %74 = arith.select %7, %69, %73 : vector<2x128xi1>, vector<2x128xf32>
    %c32_i32_27 = arith.constant 32 : i32
    %75 = tpu.dynamic_rotate %74 by %c32_i32_27 dim 1 : vector<2x128xf32>, i32 -> vector<2x128xf32>
    %c64_i32_28 = arith.constant 64 : i32
    %76 = tpu.dynamic_rotate %74 by %c64_i32_28 dim 1 : vector<2x128xf32>, i32 -> vector<2x128xf32>
    %c96_i32_29 = arith.constant 96 : i32
    %77 = tpu.dynamic_rotate %74 by %c96_i32_29 dim 1 : vector<2x128xf32>, i32 -> vector<2x128xf32>
    %78 = arith.mulf %76, %32 : vector<2x128xf32>
    %79 = arith.mulf %75, %77 : vector<2x128xf32>
    %80 = arith.addf %78, %79 : vector<2x128xf32>
    %81 = math.tanh %80 : vector<2x128xf32>
    %82 = arith.mulf %74, %81 : vector<2x128xf32>
    %cst_30 = arith.constant 0.000000e+00 : f32
    %83 = vector.broadcast %cst_30 : f32 to vector<2x128xf32>
    %84 = arith.select %9, %58, %83 : vector<2x128xi1>, vector<2x128xf32>
    %c32_i32_31 = arith.constant 32 : i32
    %85 = tpu.dynamic_rotate %84 by %c32_i32_31 dim 1 : vector<2x128xf32>, i32 -> vector<2x128xf32>
    %86 = arith.select %9, %82, %85 : vector<2x128xi1>, vector<2x128xf32>
    %87 = arith.truncf %86 : vector<2x128xf32> to vector<2x128xbf16>
    %cst_32 = arith.constant dense<0.000000e+00> : vector<2x128xf32>
    %88 = tpu.matmul %87, %1, %cst_32 {dimension_numbers = #tpu.dot_dimension_numbers<[1], [0], [0], [1], [0, 0, 1, 1], [], []>} : vector<2x128xbf16>, vector<128x128xbf16>, vector<2x128xf32> -> vector<2x128xf32>
    %89 = arith.addf %88, %4 : vector<2x128xf32>
    %cst_33 = arith.constant 5.000000e-01 : f32
    %90 = vector.broadcast %cst_33 : f32 to vector<2x128xf32>
    %91 = arith.mulf %90, %89 : vector<2x128xf32>
    %92 = arith.select %7, %89, %91 : vector<2x128xi1>, vector<2x128xf32>
    %93 = math.tanh %92 : vector<2x128xf32>
    %cst_34 = arith.constant 5.000000e-01 : f32
    %94 = vector.broadcast %cst_34 : f32 to vector<2x128xf32>
    %95 = arith.mulf %94, %93 : vector<2x128xf32>
    %cst_35 = arith.constant 5.000000e-01 : f32
    %96 = vector.broadcast %cst_35 : f32 to vector<2x128xf32>
    %97 = arith.addf %95, %96 : vector<2x128xf32>
    %98 = arith.select %7, %93, %97 : vector<2x128xi1>, vector<2x128xf32>
    %c32_i32_36 = arith.constant 32 : i32
    %99 = tpu.dynamic_rotate %98 by %c32_i32_36 dim 1 : vector<2x128xf32>, i32 -> vector<2x128xf32>
    %c64_i32_37 = arith.constant 64 : i32
    %100 = tpu.dynamic_rotate %98 by %c64_i32_37 dim 1 : vector<2x128xf32>, i32 -> vector<2x128xf32>
    %c96_i32_38 = arith.constant 96 : i32
    %101 = tpu.dynamic_rotate %98 by %c96_i32_38 dim 1 : vector<2x128xf32>, i32 -> vector<2x128xf32>
    %102 = arith.mulf %100, %56 : vector<2x128xf32>
    %103 = arith.mulf %99, %101 : vector<2x128xf32>
    %104 = arith.addf %102, %103 : vector<2x128xf32>
    %105 = math.tanh %104 : vector<2x128xf32>
    %106 = arith.mulf %98, %105 : vector<2x128xf32>
    %c2_i32_39 = arith.constant 2 : i32
    %c2_i32_40 = arith.constant 2 : i32
    %107 = arith.muli %c2_i32_39, %c2_i32_40 : i32
    %108 = tpu.assume_multiple %107, 2 : i32
    %109 = arith.index_cast %108 : i32 to index
    %c0_41 = arith.constant 0 : index
    %110 = vector.load %arg1[%109, %c0_41] : memref<16x128xf32, #tpu.memory_space<vmem>>, vector<2x128xf32>
    %111 = arith.truncf %82 : vector<2x128xf32> to vector<2x128xbf16>
    %cst_42 = arith.constant dense<0.000000e+00> : vector<2x128xf32>
    %112 = tpu.matmul %111, %0, %cst_42 {dimension_numbers = #tpu.dot_dimension_numbers<[1], [0], [0], [1], [0, 0, 1, 1], [], []>} : vector<2x128xbf16>, vector<128x128xbf16>, vector<2x128xf32> -> vector<2x128xf32>
    %113 = arith.addf %110, %112 : vector<2x128xf32>
    %cst_43 = arith.constant 5.000000e-01 : f32
    %114 = vector.broadcast %cst_43 : f32 to vector<2x128xf32>
    %115 = arith.mulf %114, %113 : vector<2x128xf32>
    %116 = arith.select %7, %113, %115 : vector<2x128xi1>, vector<2x128xf32>
    %117 = math.tanh %116 : vector<2x128xf32>
    %cst_44 = arith.constant 5.000000e-01 : f32
    %118 = vector.broadcast %cst_44 : f32 to vector<2x128xf32>
    %119 = arith.mulf %118, %117 : vector<2x128xf32>
    %cst_45 = arith.constant 5.000000e-01 : f32
    %120 = vector.broadcast %cst_45 : f32 to vector<2x128xf32>
    %121 = arith.addf %119, %120 : vector<2x128xf32>
    %122 = arith.select %7, %117, %121 : vector<2x128xi1>, vector<2x128xf32>
    %c32_i32_46 = arith.constant 32 : i32
    %123 = tpu.dynamic_rotate %122 by %c32_i32_46 dim 1 : vector<2x128xf32>, i32 -> vector<2x128xf32>
    %c64_i32_47 = arith.constant 64 : i32
    %124 = tpu.dynamic_rotate %122 by %c64_i32_47 dim 1 : vector<2x128xf32>, i32 -> vector<2x128xf32>
    %c96_i32_48 = arith.constant 96 : i32
    %125 = tpu.dynamic_rotate %122 by %c96_i32_48 dim 1 : vector<2x128xf32>, i32 -> vector<2x128xf32>
    %126 = arith.mulf %124, %80 : vector<2x128xf32>
    %127 = arith.mulf %123, %125 : vector<2x128xf32>
    %128 = arith.addf %126, %127 : vector<2x128xf32>
    %129 = math.tanh %128 : vector<2x128xf32>
    %130 = arith.mulf %122, %129 : vector<2x128xf32>
    %cst_49 = arith.constant 0.000000e+00 : f32
    %131 = vector.broadcast %cst_49 : f32 to vector<2x128xf32>
    %132 = arith.select %9, %106, %131 : vector<2x128xi1>, vector<2x128xf32>
    %c32_i32_50 = arith.constant 32 : i32
    %133 = tpu.dynamic_rotate %132 by %c32_i32_50 dim 1 : vector<2x128xf32>, i32 -> vector<2x128xf32>
    %134 = arith.select %9, %130, %133 : vector<2x128xi1>, vector<2x128xf32>
    %135 = arith.truncf %134 : vector<2x128xf32> to vector<2x128xbf16>
    %cst_51 = arith.constant dense<0.000000e+00> : vector<2x128xf32>
    %136 = tpu.matmul %135, %1, %cst_51 {dimension_numbers = #tpu.dot_dimension_numbers<[1], [0], [0], [1], [0, 0, 1, 1], [], []>} : vector<2x128xbf16>, vector<128x128xbf16>, vector<2x128xf32> -> vector<2x128xf32>
    %137 = arith.addf %136, %4 : vector<2x128xf32>
    %cst_52 = arith.constant 5.000000e-01 : f32
    %138 = vector.broadcast %cst_52 : f32 to vector<2x128xf32>
    %139 = arith.mulf %138, %137 : vector<2x128xf32>
    %140 = arith.select %7, %137, %139 : vector<2x128xi1>, vector<2x128xf32>
    %141 = math.tanh %140 : vector<2x128xf32>
    %cst_53 = arith.constant 5.000000e-01 : f32
    %142 = vector.broadcast %cst_53 : f32 to vector<2x128xf32>
    %143 = arith.mulf %142, %141 : vector<2x128xf32>
    %cst_54 = arith.constant 5.000000e-01 : f32
    %144 = vector.broadcast %cst_54 : f32 to vector<2x128xf32>
    %145 = arith.addf %143, %144 : vector<2x128xf32>
    %146 = arith.select %7, %141, %145 : vector<2x128xi1>, vector<2x128xf32>
    %c32_i32_55 = arith.constant 32 : i32
    %147 = tpu.dynamic_rotate %146 by %c32_i32_55 dim 1 : vector<2x128xf32>, i32 -> vector<2x128xf32>
    %c64_i32_56 = arith.constant 64 : i32
    %148 = tpu.dynamic_rotate %146 by %c64_i32_56 dim 1 : vector<2x128xf32>, i32 -> vector<2x128xf32>
    %c96_i32_57 = arith.constant 96 : i32
    %149 = tpu.dynamic_rotate %146 by %c96_i32_57 dim 1 : vector<2x128xf32>, i32 -> vector<2x128xf32>
    %150 = arith.mulf %148, %104 : vector<2x128xf32>
    %151 = arith.mulf %147, %149 : vector<2x128xf32>
    %152 = arith.addf %150, %151 : vector<2x128xf32>
    %153 = math.tanh %152 : vector<2x128xf32>
    %154 = arith.mulf %146, %153 : vector<2x128xf32>
    %c3_i32 = arith.constant 3 : i32
    %c2_i32_58 = arith.constant 2 : i32
    %155 = arith.muli %c3_i32, %c2_i32_58 : i32
    %156 = tpu.assume_multiple %155, 2 : i32
    %157 = arith.index_cast %156 : i32 to index
    %c0_59 = arith.constant 0 : index
    %158 = vector.load %arg1[%157, %c0_59] : memref<16x128xf32, #tpu.memory_space<vmem>>, vector<2x128xf32>
    %159 = arith.truncf %130 : vector<2x128xf32> to vector<2x128xbf16>
    %cst_60 = arith.constant dense<0.000000e+00> : vector<2x128xf32>
    %160 = tpu.matmul %159, %0, %cst_60 {dimension_numbers = #tpu.dot_dimension_numbers<[1], [0], [0], [1], [0, 0, 1, 1], [], []>} : vector<2x128xbf16>, vector<128x128xbf16>, vector<2x128xf32> -> vector<2x128xf32>
    %161 = arith.addf %158, %160 : vector<2x128xf32>
    %cst_61 = arith.constant 5.000000e-01 : f32
    %162 = vector.broadcast %cst_61 : f32 to vector<2x128xf32>
    %163 = arith.mulf %162, %161 : vector<2x128xf32>
    %164 = arith.select %7, %161, %163 : vector<2x128xi1>, vector<2x128xf32>
    %165 = math.tanh %164 : vector<2x128xf32>
    %cst_62 = arith.constant 5.000000e-01 : f32
    %166 = vector.broadcast %cst_62 : f32 to vector<2x128xf32>
    %167 = arith.mulf %166, %165 : vector<2x128xf32>
    %cst_63 = arith.constant 5.000000e-01 : f32
    %168 = vector.broadcast %cst_63 : f32 to vector<2x128xf32>
    %169 = arith.addf %167, %168 : vector<2x128xf32>
    %170 = arith.select %7, %165, %169 : vector<2x128xi1>, vector<2x128xf32>
    %c32_i32_64 = arith.constant 32 : i32
    %171 = tpu.dynamic_rotate %170 by %c32_i32_64 dim 1 : vector<2x128xf32>, i32 -> vector<2x128xf32>
    %c64_i32_65 = arith.constant 64 : i32
    %172 = tpu.dynamic_rotate %170 by %c64_i32_65 dim 1 : vector<2x128xf32>, i32 -> vector<2x128xf32>
    %c96_i32_66 = arith.constant 96 : i32
    %173 = tpu.dynamic_rotate %170 by %c96_i32_66 dim 1 : vector<2x128xf32>, i32 -> vector<2x128xf32>
    %174 = arith.mulf %172, %128 : vector<2x128xf32>
    %175 = arith.mulf %171, %173 : vector<2x128xf32>
    %176 = arith.addf %174, %175 : vector<2x128xf32>
    %177 = math.tanh %176 : vector<2x128xf32>
    %178 = arith.mulf %170, %177 : vector<2x128xf32>
    %cst_67 = arith.constant 0.000000e+00 : f32
    %179 = vector.broadcast %cst_67 : f32 to vector<2x128xf32>
    %180 = arith.select %9, %154, %179 : vector<2x128xi1>, vector<2x128xf32>
    %c32_i32_68 = arith.constant 32 : i32
    %181 = tpu.dynamic_rotate %180 by %c32_i32_68 dim 1 : vector<2x128xf32>, i32 -> vector<2x128xf32>
    %182 = arith.select %9, %178, %181 : vector<2x128xi1>, vector<2x128xf32>
    %183 = arith.truncf %182 : vector<2x128xf32> to vector<2x128xbf16>
    %cst_69 = arith.constant dense<0.000000e+00> : vector<2x128xf32>
    %184 = tpu.matmul %183, %1, %cst_69 {dimension_numbers = #tpu.dot_dimension_numbers<[1], [0], [0], [1], [0, 0, 1, 1], [], []>} : vector<2x128xbf16>, vector<128x128xbf16>, vector<2x128xf32> -> vector<2x128xf32>
    %185 = arith.addf %184, %4 : vector<2x128xf32>
    %cst_70 = arith.constant 5.000000e-01 : f32
    %186 = vector.broadcast %cst_70 : f32 to vector<2x128xf32>
    %187 = arith.mulf %186, %185 : vector<2x128xf32>
    %188 = arith.select %7, %185, %187 : vector<2x128xi1>, vector<2x128xf32>
    %189 = math.tanh %188 : vector<2x128xf32>
    %cst_71 = arith.constant 5.000000e-01 : f32
    %190 = vector.broadcast %cst_71 : f32 to vector<2x128xf32>
    %191 = arith.mulf %190, %189 : vector<2x128xf32>
    %cst_72 = arith.constant 5.000000e-01 : f32
    %192 = vector.broadcast %cst_72 : f32 to vector<2x128xf32>
    %193 = arith.addf %191, %192 : vector<2x128xf32>
    %194 = arith.select %7, %189, %193 : vector<2x128xi1>, vector<2x128xf32>
    %c32_i32_73 = arith.constant 32 : i32
    %195 = tpu.dynamic_rotate %194 by %c32_i32_73 dim 1 : vector<2x128xf32>, i32 -> vector<2x128xf32>
    %c64_i32_74 = arith.constant 64 : i32
    %196 = tpu.dynamic_rotate %194 by %c64_i32_74 dim 1 : vector<2x128xf32>, i32 -> vector<2x128xf32>
    %c96_i32_75 = arith.constant 96 : i32
    %197 = tpu.dynamic_rotate %194 by %c96_i32_75 dim 1 : vector<2x128xf32>, i32 -> vector<2x128xf32>
    %198 = arith.mulf %196, %152 : vector<2x128xf32>
    %199 = arith.mulf %195, %197 : vector<2x128xf32>
    %200 = arith.addf %198, %199 : vector<2x128xf32>
    %201 = math.tanh %200 : vector<2x128xf32>
    %202 = arith.mulf %194, %201 : vector<2x128xf32>
    %c4_i32 = arith.constant 4 : i32
    %c2_i32_76 = arith.constant 2 : i32
    %203 = arith.muli %c4_i32, %c2_i32_76 : i32
    %204 = tpu.assume_multiple %203, 2 : i32
    %205 = arith.index_cast %204 : i32 to index
    %c0_77 = arith.constant 0 : index
    %206 = vector.load %arg1[%205, %c0_77] : memref<16x128xf32, #tpu.memory_space<vmem>>, vector<2x128xf32>
    %207 = arith.truncf %178 : vector<2x128xf32> to vector<2x128xbf16>
    %cst_78 = arith.constant dense<0.000000e+00> : vector<2x128xf32>
    %208 = tpu.matmul %207, %0, %cst_78 {dimension_numbers = #tpu.dot_dimension_numbers<[1], [0], [0], [1], [0, 0, 1, 1], [], []>} : vector<2x128xbf16>, vector<128x128xbf16>, vector<2x128xf32> -> vector<2x128xf32>
    %209 = arith.addf %206, %208 : vector<2x128xf32>
    %cst_79 = arith.constant 5.000000e-01 : f32
    %210 = vector.broadcast %cst_79 : f32 to vector<2x128xf32>
    %211 = arith.mulf %210, %209 : vector<2x128xf32>
    %212 = arith.select %7, %209, %211 : vector<2x128xi1>, vector<2x128xf32>
    %213 = math.tanh %212 : vector<2x128xf32>
    %cst_80 = arith.constant 5.000000e-01 : f32
    %214 = vector.broadcast %cst_80 : f32 to vector<2x128xf32>
    %215 = arith.mulf %214, %213 : vector<2x128xf32>
    %cst_81 = arith.constant 5.000000e-01 : f32
    %216 = vector.broadcast %cst_81 : f32 to vector<2x128xf32>
    %217 = arith.addf %215, %216 : vector<2x128xf32>
    %218 = arith.select %7, %213, %217 : vector<2x128xi1>, vector<2x128xf32>
    %c32_i32_82 = arith.constant 32 : i32
    %219 = tpu.dynamic_rotate %218 by %c32_i32_82 dim 1 : vector<2x128xf32>, i32 -> vector<2x128xf32>
    %c64_i32_83 = arith.constant 64 : i32
    %220 = tpu.dynamic_rotate %218 by %c64_i32_83 dim 1 : vector<2x128xf32>, i32 -> vector<2x128xf32>
    %c96_i32_84 = arith.constant 96 : i32
    %221 = tpu.dynamic_rotate %218 by %c96_i32_84 dim 1 : vector<2x128xf32>, i32 -> vector<2x128xf32>
    %222 = arith.mulf %220, %176 : vector<2x128xf32>
    %223 = arith.mulf %219, %221 : vector<2x128xf32>
    %224 = arith.addf %222, %223 : vector<2x128xf32>
    %225 = math.tanh %224 : vector<2x128xf32>
    %226 = arith.mulf %218, %225 : vector<2x128xf32>
    %cst_85 = arith.constant 0.000000e+00 : f32
    %227 = vector.broadcast %cst_85 : f32 to vector<2x128xf32>
    %228 = arith.select %9, %202, %227 : vector<2x128xi1>, vector<2x128xf32>
    %c32_i32_86 = arith.constant 32 : i32
    %229 = tpu.dynamic_rotate %228 by %c32_i32_86 dim 1 : vector<2x128xf32>, i32 -> vector<2x128xf32>
    %230 = arith.select %9, %226, %229 : vector<2x128xi1>, vector<2x128xf32>
    %231 = arith.truncf %230 : vector<2x128xf32> to vector<2x128xbf16>
    %cst_87 = arith.constant dense<0.000000e+00> : vector<2x128xf32>
    %232 = tpu.matmul %231, %1, %cst_87 {dimension_numbers = #tpu.dot_dimension_numbers<[1], [0], [0], [1], [0, 0, 1, 1], [], []>} : vector<2x128xbf16>, vector<128x128xbf16>, vector<2x128xf32> -> vector<2x128xf32>
    %233 = arith.addf %232, %4 : vector<2x128xf32>
    %cst_88 = arith.constant 5.000000e-01 : f32
    %234 = vector.broadcast %cst_88 : f32 to vector<2x128xf32>
    %235 = arith.mulf %234, %233 : vector<2x128xf32>
    %236 = arith.select %7, %233, %235 : vector<2x128xi1>, vector<2x128xf32>
    %237 = math.tanh %236 : vector<2x128xf32>
    %cst_89 = arith.constant 5.000000e-01 : f32
    %238 = vector.broadcast %cst_89 : f32 to vector<2x128xf32>
    %239 = arith.mulf %238, %237 : vector<2x128xf32>
    %cst_90 = arith.constant 5.000000e-01 : f32
    %240 = vector.broadcast %cst_90 : f32 to vector<2x128xf32>
    %241 = arith.addf %239, %240 : vector<2x128xf32>
    %242 = arith.select %7, %237, %241 : vector<2x128xi1>, vector<2x128xf32>
    %c32_i32_91 = arith.constant 32 : i32
    %243 = tpu.dynamic_rotate %242 by %c32_i32_91 dim 1 : vector<2x128xf32>, i32 -> vector<2x128xf32>
    %c64_i32_92 = arith.constant 64 : i32
    %244 = tpu.dynamic_rotate %242 by %c64_i32_92 dim 1 : vector<2x128xf32>, i32 -> vector<2x128xf32>
    %c96_i32_93 = arith.constant 96 : i32
    %245 = tpu.dynamic_rotate %242 by %c96_i32_93 dim 1 : vector<2x128xf32>, i32 -> vector<2x128xf32>
    %246 = arith.mulf %244, %200 : vector<2x128xf32>
    %247 = arith.mulf %243, %245 : vector<2x128xf32>
    %248 = arith.addf %246, %247 : vector<2x128xf32>
    %249 = math.tanh %248 : vector<2x128xf32>
    %250 = arith.mulf %242, %249 : vector<2x128xf32>
    %c5_i32 = arith.constant 5 : i32
    %c2_i32_94 = arith.constant 2 : i32
    %251 = arith.muli %c5_i32, %c2_i32_94 : i32
    %252 = tpu.assume_multiple %251, 2 : i32
    %253 = arith.index_cast %252 : i32 to index
    %c0_95 = arith.constant 0 : index
    %254 = vector.load %arg1[%253, %c0_95] : memref<16x128xf32, #tpu.memory_space<vmem>>, vector<2x128xf32>
    %255 = arith.truncf %226 : vector<2x128xf32> to vector<2x128xbf16>
    %cst_96 = arith.constant dense<0.000000e+00> : vector<2x128xf32>
    %256 = tpu.matmul %255, %0, %cst_96 {dimension_numbers = #tpu.dot_dimension_numbers<[1], [0], [0], [1], [0, 0, 1, 1], [], []>} : vector<2x128xbf16>, vector<128x128xbf16>, vector<2x128xf32> -> vector<2x128xf32>
    %257 = arith.addf %254, %256 : vector<2x128xf32>
    %cst_97 = arith.constant 5.000000e-01 : f32
    %258 = vector.broadcast %cst_97 : f32 to vector<2x128xf32>
    %259 = arith.mulf %258, %257 : vector<2x128xf32>
    %260 = arith.select %7, %257, %259 : vector<2x128xi1>, vector<2x128xf32>
    %261 = math.tanh %260 : vector<2x128xf32>
    %cst_98 = arith.constant 5.000000e-01 : f32
    %262 = vector.broadcast %cst_98 : f32 to vector<2x128xf32>
    %263 = arith.mulf %262, %261 : vector<2x128xf32>
    %cst_99 = arith.constant 5.000000e-01 : f32
    %264 = vector.broadcast %cst_99 : f32 to vector<2x128xf32>
    %265 = arith.addf %263, %264 : vector<2x128xf32>
    %266 = arith.select %7, %261, %265 : vector<2x128xi1>, vector<2x128xf32>
    %c32_i32_100 = arith.constant 32 : i32
    %267 = tpu.dynamic_rotate %266 by %c32_i32_100 dim 1 : vector<2x128xf32>, i32 -> vector<2x128xf32>
    %c64_i32_101 = arith.constant 64 : i32
    %268 = tpu.dynamic_rotate %266 by %c64_i32_101 dim 1 : vector<2x128xf32>, i32 -> vector<2x128xf32>
    %c96_i32_102 = arith.constant 96 : i32
    %269 = tpu.dynamic_rotate %266 by %c96_i32_102 dim 1 : vector<2x128xf32>, i32 -> vector<2x128xf32>
    %270 = arith.mulf %268, %224 : vector<2x128xf32>
    %271 = arith.mulf %267, %269 : vector<2x128xf32>
    %272 = arith.addf %270, %271 : vector<2x128xf32>
    %273 = math.tanh %272 : vector<2x128xf32>
    %274 = arith.mulf %266, %273 : vector<2x128xf32>
    %cst_103 = arith.constant 0.000000e+00 : f32
    %275 = vector.broadcast %cst_103 : f32 to vector<2x128xf32>
    %276 = arith.select %9, %250, %275 : vector<2x128xi1>, vector<2x128xf32>
    %c32_i32_104 = arith.constant 32 : i32
    %277 = tpu.dynamic_rotate %276 by %c32_i32_104 dim 1 : vector<2x128xf32>, i32 -> vector<2x128xf32>
    %278 = arith.select %9, %274, %277 : vector<2x128xi1>, vector<2x128xf32>
    %279 = arith.truncf %278 : vector<2x128xf32> to vector<2x128xbf16>
    %cst_105 = arith.constant dense<0.000000e+00> : vector<2x128xf32>
    %280 = tpu.matmul %279, %1, %cst_105 {dimension_numbers = #tpu.dot_dimension_numbers<[1], [0], [0], [1], [0, 0, 1, 1], [], []>} : vector<2x128xbf16>, vector<128x128xbf16>, vector<2x128xf32> -> vector<2x128xf32>
    %281 = arith.addf %280, %4 : vector<2x128xf32>
    %cst_106 = arith.constant 5.000000e-01 : f32
    %282 = vector.broadcast %cst_106 : f32 to vector<2x128xf32>
    %283 = arith.mulf %282, %281 : vector<2x128xf32>
    %284 = arith.select %7, %281, %283 : vector<2x128xi1>, vector<2x128xf32>
    %285 = math.tanh %284 : vector<2x128xf32>
    %cst_107 = arith.constant 5.000000e-01 : f32
    %286 = vector.broadcast %cst_107 : f32 to vector<2x128xf32>
    %287 = arith.mulf %286, %285 : vector<2x128xf32>
    %cst_108 = arith.constant 5.000000e-01 : f32
    %288 = vector.broadcast %cst_108 : f32 to vector<2x128xf32>
    %289 = arith.addf %287, %288 : vector<2x128xf32>
    %290 = arith.select %7, %285, %289 : vector<2x128xi1>, vector<2x128xf32>
    %c32_i32_109 = arith.constant 32 : i32
    %291 = tpu.dynamic_rotate %290 by %c32_i32_109 dim 1 : vector<2x128xf32>, i32 -> vector<2x128xf32>
    %c64_i32_110 = arith.constant 64 : i32
    %292 = tpu.dynamic_rotate %290 by %c64_i32_110 dim 1 : vector<2x128xf32>, i32 -> vector<2x128xf32>
    %c96_i32_111 = arith.constant 96 : i32
    %293 = tpu.dynamic_rotate %290 by %c96_i32_111 dim 1 : vector<2x128xf32>, i32 -> vector<2x128xf32>
    %294 = arith.mulf %292, %248 : vector<2x128xf32>
    %295 = arith.mulf %291, %293 : vector<2x128xf32>
    %296 = arith.addf %294, %295 : vector<2x128xf32>
    %297 = math.tanh %296 : vector<2x128xf32>
    %298 = arith.mulf %290, %297 : vector<2x128xf32>
    %c6_i32 = arith.constant 6 : i32
    %c2_i32_112 = arith.constant 2 : i32
    %299 = arith.muli %c6_i32, %c2_i32_112 : i32
    %300 = tpu.assume_multiple %299, 2 : i32
    %301 = arith.index_cast %300 : i32 to index
    %c0_113 = arith.constant 0 : index
    %302 = vector.load %arg1[%301, %c0_113] : memref<16x128xf32, #tpu.memory_space<vmem>>, vector<2x128xf32>
    %303 = arith.truncf %274 : vector<2x128xf32> to vector<2x128xbf16>
    %cst_114 = arith.constant dense<0.000000e+00> : vector<2x128xf32>
    %304 = tpu.matmul %303, %0, %cst_114 {dimension_numbers = #tpu.dot_dimension_numbers<[1], [0], [0], [1], [0, 0, 1, 1], [], []>} : vector<2x128xbf16>, vector<128x128xbf16>, vector<2x128xf32> -> vector<2x128xf32>
    %305 = arith.addf %302, %304 : vector<2x128xf32>
    %cst_115 = arith.constant 5.000000e-01 : f32
    %306 = vector.broadcast %cst_115 : f32 to vector<2x128xf32>
    %307 = arith.mulf %306, %305 : vector<2x128xf32>
    %308 = arith.select %7, %305, %307 : vector<2x128xi1>, vector<2x128xf32>
    %309 = math.tanh %308 : vector<2x128xf32>
    %cst_116 = arith.constant 5.000000e-01 : f32
    %310 = vector.broadcast %cst_116 : f32 to vector<2x128xf32>
    %311 = arith.mulf %310, %309 : vector<2x128xf32>
    %cst_117 = arith.constant 5.000000e-01 : f32
    %312 = vector.broadcast %cst_117 : f32 to vector<2x128xf32>
    %313 = arith.addf %311, %312 : vector<2x128xf32>
    %314 = arith.select %7, %309, %313 : vector<2x128xi1>, vector<2x128xf32>
    %c32_i32_118 = arith.constant 32 : i32
    %315 = tpu.dynamic_rotate %314 by %c32_i32_118 dim 1 : vector<2x128xf32>, i32 -> vector<2x128xf32>
    %c64_i32_119 = arith.constant 64 : i32
    %316 = tpu.dynamic_rotate %314 by %c64_i32_119 dim 1 : vector<2x128xf32>, i32 -> vector<2x128xf32>
    %c96_i32_120 = arith.constant 96 : i32
    %317 = tpu.dynamic_rotate %314 by %c96_i32_120 dim 1 : vector<2x128xf32>, i32 -> vector<2x128xf32>
    %318 = arith.mulf %316, %272 : vector<2x128xf32>
    %319 = arith.mulf %315, %317 : vector<2x128xf32>
    %320 = arith.addf %318, %319 : vector<2x128xf32>
    %321 = math.tanh %320 : vector<2x128xf32>
    %322 = arith.mulf %314, %321 : vector<2x128xf32>
    %cst_121 = arith.constant 0.000000e+00 : f32
    %323 = vector.broadcast %cst_121 : f32 to vector<2x128xf32>
    %324 = arith.select %9, %298, %323 : vector<2x128xi1>, vector<2x128xf32>
    %c32_i32_122 = arith.constant 32 : i32
    %325 = tpu.dynamic_rotate %324 by %c32_i32_122 dim 1 : vector<2x128xf32>, i32 -> vector<2x128xf32>
    %326 = arith.select %9, %322, %325 : vector<2x128xi1>, vector<2x128xf32>
    %327 = arith.truncf %326 : vector<2x128xf32> to vector<2x128xbf16>
    %cst_123 = arith.constant dense<0.000000e+00> : vector<2x128xf32>
    %328 = tpu.matmul %327, %1, %cst_123 {dimension_numbers = #tpu.dot_dimension_numbers<[1], [0], [0], [1], [0, 0, 1, 1], [], []>} : vector<2x128xbf16>, vector<128x128xbf16>, vector<2x128xf32> -> vector<2x128xf32>
    %329 = arith.addf %328, %4 : vector<2x128xf32>
    %cst_124 = arith.constant 5.000000e-01 : f32
    %330 = vector.broadcast %cst_124 : f32 to vector<2x128xf32>
    %331 = arith.mulf %330, %329 : vector<2x128xf32>
    %332 = arith.select %7, %329, %331 : vector<2x128xi1>, vector<2x128xf32>
    %333 = math.tanh %332 : vector<2x128xf32>
    %cst_125 = arith.constant 5.000000e-01 : f32
    %334 = vector.broadcast %cst_125 : f32 to vector<2x128xf32>
    %335 = arith.mulf %334, %333 : vector<2x128xf32>
    %cst_126 = arith.constant 5.000000e-01 : f32
    %336 = vector.broadcast %cst_126 : f32 to vector<2x128xf32>
    %337 = arith.addf %335, %336 : vector<2x128xf32>
    %338 = arith.select %7, %333, %337 : vector<2x128xi1>, vector<2x128xf32>
    %c32_i32_127 = arith.constant 32 : i32
    %339 = tpu.dynamic_rotate %338 by %c32_i32_127 dim 1 : vector<2x128xf32>, i32 -> vector<2x128xf32>
    %c64_i32_128 = arith.constant 64 : i32
    %340 = tpu.dynamic_rotate %338 by %c64_i32_128 dim 1 : vector<2x128xf32>, i32 -> vector<2x128xf32>
    %c96_i32_129 = arith.constant 96 : i32
    %341 = tpu.dynamic_rotate %338 by %c96_i32_129 dim 1 : vector<2x128xf32>, i32 -> vector<2x128xf32>
    %342 = arith.mulf %340, %296 : vector<2x128xf32>
    %343 = arith.mulf %339, %341 : vector<2x128xf32>
    %344 = arith.addf %342, %343 : vector<2x128xf32>
    %345 = math.tanh %344 : vector<2x128xf32>
    %346 = arith.mulf %338, %345 : vector<2x128xf32>
    %c7_i32 = arith.constant 7 : i32
    %c2_i32_130 = arith.constant 2 : i32
    %347 = arith.muli %c7_i32, %c2_i32_130 : i32
    %348 = tpu.assume_multiple %347, 2 : i32
    %349 = arith.index_cast %348 : i32 to index
    %c0_131 = arith.constant 0 : index
    %350 = vector.load %arg1[%349, %c0_131] : memref<16x128xf32, #tpu.memory_space<vmem>>, vector<2x128xf32>
    %351 = arith.truncf %322 : vector<2x128xf32> to vector<2x128xbf16>
    %cst_132 = arith.constant dense<0.000000e+00> : vector<2x128xf32>
    %352 = tpu.matmul %351, %0, %cst_132 {dimension_numbers = #tpu.dot_dimension_numbers<[1], [0], [0], [1], [0, 0, 1, 1], [], []>} : vector<2x128xbf16>, vector<128x128xbf16>, vector<2x128xf32> -> vector<2x128xf32>
    %353 = arith.addf %350, %352 : vector<2x128xf32>
    %cst_133 = arith.constant 5.000000e-01 : f32
    %354 = vector.broadcast %cst_133 : f32 to vector<2x128xf32>
    %355 = arith.mulf %354, %353 : vector<2x128xf32>
    %356 = arith.select %7, %353, %355 : vector<2x128xi1>, vector<2x128xf32>
    %357 = math.tanh %356 : vector<2x128xf32>
    %cst_134 = arith.constant 5.000000e-01 : f32
    %358 = vector.broadcast %cst_134 : f32 to vector<2x128xf32>
    %359 = arith.mulf %358, %357 : vector<2x128xf32>
    %cst_135 = arith.constant 5.000000e-01 : f32
    %360 = vector.broadcast %cst_135 : f32 to vector<2x128xf32>
    %361 = arith.addf %359, %360 : vector<2x128xf32>
    %362 = arith.select %7, %357, %361 : vector<2x128xi1>, vector<2x128xf32>
    %c32_i32_136 = arith.constant 32 : i32
    %363 = tpu.dynamic_rotate %362 by %c32_i32_136 dim 1 : vector<2x128xf32>, i32 -> vector<2x128xf32>
    %c64_i32_137 = arith.constant 64 : i32
    %364 = tpu.dynamic_rotate %362 by %c64_i32_137 dim 1 : vector<2x128xf32>, i32 -> vector<2x128xf32>
    %c96_i32_138 = arith.constant 96 : i32
    %365 = tpu.dynamic_rotate %362 by %c96_i32_138 dim 1 : vector<2x128xf32>, i32 -> vector<2x128xf32>
    %366 = arith.mulf %364, %320 : vector<2x128xf32>
    %367 = arith.mulf %363, %365 : vector<2x128xf32>
    %368 = arith.addf %366, %367 : vector<2x128xf32>
    %369 = math.tanh %368 : vector<2x128xf32>
    %370 = arith.mulf %362, %369 : vector<2x128xf32>
    %cst_139 = arith.constant 0.000000e+00 : f32
    %371 = vector.broadcast %cst_139 : f32 to vector<2x128xf32>
    %372 = arith.select %9, %346, %371 : vector<2x128xi1>, vector<2x128xf32>
    %c32_i32_140 = arith.constant 32 : i32
    %373 = tpu.dynamic_rotate %372 by %c32_i32_140 dim 1 : vector<2x128xf32>, i32 -> vector<2x128xf32>
    %374 = arith.select %9, %370, %373 : vector<2x128xi1>, vector<2x128xf32>
    %375 = arith.truncf %374 : vector<2x128xf32> to vector<2x128xbf16>
    %cst_141 = arith.constant dense<0.000000e+00> : vector<2x128xf32>
    %376 = tpu.matmul %375, %1, %cst_141 {dimension_numbers = #tpu.dot_dimension_numbers<[1], [0], [0], [1], [0, 0, 1, 1], [], []>} : vector<2x128xbf16>, vector<128x128xbf16>, vector<2x128xf32> -> vector<2x128xf32>
    %377 = arith.addf %376, %4 : vector<2x128xf32>
    %cst_142 = arith.constant 5.000000e-01 : f32
    %378 = vector.broadcast %cst_142 : f32 to vector<2x128xf32>
    %379 = arith.mulf %378, %377 : vector<2x128xf32>
    %380 = arith.select %7, %377, %379 : vector<2x128xi1>, vector<2x128xf32>
    %381 = math.tanh %380 : vector<2x128xf32>
    %cst_143 = arith.constant 5.000000e-01 : f32
    %382 = vector.broadcast %cst_143 : f32 to vector<2x128xf32>
    %383 = arith.mulf %382, %381 : vector<2x128xf32>
    %cst_144 = arith.constant 5.000000e-01 : f32
    %384 = vector.broadcast %cst_144 : f32 to vector<2x128xf32>
    %385 = arith.addf %383, %384 : vector<2x128xf32>
    %386 = arith.select %7, %381, %385 : vector<2x128xi1>, vector<2x128xf32>
    %c32_i32_145 = arith.constant 32 : i32
    %387 = tpu.dynamic_rotate %386 by %c32_i32_145 dim 1 : vector<2x128xf32>, i32 -> vector<2x128xf32>
    %c64_i32_146 = arith.constant 64 : i32
    %388 = tpu.dynamic_rotate %386 by %c64_i32_146 dim 1 : vector<2x128xf32>, i32 -> vector<2x128xf32>
    %c96_i32_147 = arith.constant 96 : i32
    %389 = tpu.dynamic_rotate %386 by %c96_i32_147 dim 1 : vector<2x128xf32>, i32 -> vector<2x128xf32>
    %390 = arith.mulf %388, %344 : vector<2x128xf32>
    %391 = arith.mulf %387, %389 : vector<2x128xf32>
    %392 = arith.addf %390, %391 : vector<2x128xf32>
    %393 = math.tanh %392 : vector<2x128xf32>
    %394 = arith.mulf %386, %393 : vector<2x128xf32>
    %c8_i32 = arith.constant 8 : i32
    %c0_148 = arith.constant 0 : index
    %c0_149 = arith.constant 0 : index
    %395 = vector.load %arg5[%c0_148, %c0_149] : memref<2x128xf32, #tpu.memory_space<vmem>>, vector<2x128xf32>
    tpu.vector_store %arg5[%c0_148, %c0_149], %394 {strides = array<i32>} : memref<2x128xf32, #tpu.memory_space<vmem>>, vector<2x128xf32>,
    return
  }
  func.func @transform_0(%arg0: i32) -> (i32, i32) {
    %c0_i32 = arith.constant 0 : i32
    %c0_i32_0 = arith.constant 0 : i32
    %c0_i32_1 = arith.constant 0 : i32
    return %c0_i32, %c0_i32_0 : i32, i32
  }
  func.func @transform_1(%arg0: i32) -> (i32, i32) {
    %c0_i32 = arith.constant 0 : i32
    %c0_i32_0 = arith.constant 0 : i32
    %c0_i32_1 = arith.constant 0 : i32
    return %c0_i32, %c0_i32_0 : i32, i32
  }
  func.func @transform_2(%arg0: i32) -> (i32, i32) {
    %c0_i32 = arith.constant 0 : i32
    %c0_i32_0 = arith.constant 0 : i32
    %c0_i32_1 = arith.constant 0 : i32
    return %c0_i32, %c0_i32_0 : i32, i32
  }
  func.func @transform_3(%arg0: i32) -> (i32, i32) {
    %c0_i32 = arith.constant 0 : i32
    %c0_i32_0 = arith.constant 0 : i32
    %c0_i32_1 = arith.constant 0 : i32
    return %c0_i32, %c0_i32_0 : i32, i32
  }
  func.func @transform_4(%arg0: i32) -> (i32, i32) {
    %c0_i32 = arith.constant 0 : i32
    %c0_i32_0 = arith.constant 0 : i32
    %c0_i32_1 = arith.constant 0 : i32
    return %c0_i32, %c0_i32_0 : i32, i32
  }
}

</mosaic_0001>

<llo_original>
// kernel: split.43
$region0: #{split.43}
  #allocation0 [shape = 'u32[2048]{0}', space=vmem, size = 0x2000, scoped, tag = 'scoped memory for split.43']
  #allocation1 [shape = 'u32[2048]{0}', space=vmem, size = 0x2000, scoped, tag = 'scoped memory for split.43']
  #allocation2 [shape = 'u32[2048]{0}', space=vmem, size = 0x2000, scoped, tag = 'scoped memory for split.43']
  #allocation3 [shape = 'u32[2048]{0}', space=vmem, size = 0x2000, scoped, tag = 'scoped memory for split.43']
  #allocation4 [shape = 'u32[2048]{0}', space=vmem, size = 0x2000, scoped, tag = 'scoped memory for split.43']
  #allocation5 [shape = 's32[1]{0}', space=sflag, size = 0x4, scoped, tag = 'scoped memory for split.43']
  %s0 = inlined_call_operand.vmem [shape: f32[32,128], index: 0, kind: input, shape index: {}]
  %s1 = inlined_call_operand.vmem [shape: bf16[32,32], index: 1, kind: output, shape index: {}]
  %v2 = vld [vmem:[%s0] sm:$0xff]
  %v3 = vlaneseq
  %v4 = vand.u32 %v3, 127
  %vm5 = vcmp.lt.s32.totalorder %v4, 96
  %v6 = vsel %vm5, 0, %v2
  %7 = vrot.lane.b32.xlu0 %v6, 32
  %v8 = vpop.permute.xlu0 %7
  %v9 = vpack.i.bf16 %v8, 0.0
  %v10 = vpack.c.bf16 0.0, %v9
  %11 = vst [vmem:[%s1] sm:$0xf] %v10
  %s12 = scalar_lea.vmem %s0, 8
  %v13 = vld [vmem:[%s12] sm:$0xff]
  %v14 = vlaneseq
  %v15 = vand.u32 %v14, 127
  %vm16 = vcmp.lt.s32.totalorder %v15, 96
  %v17 = vsel %vm16, 0, %v13
  %18 = vrot.lane.b32.xlu0 %v17, 32
  %v19 = vpop.permute.xlu0 %18
  %v20 = vpack.i.bf16 %v19, 0.0
  %s21 = scalar_lea.vmem %s1, 4
  %v22 = vpack.c.bf16 0.0, %v20
  %23 = vst [vmem:[%s21] sm:$0xf] %v22
  %s24 = scalar_lea.vmem %s0, 16
  %v25 = vld [vmem:[%s24] sm:$0xff]
  %v26 = vlaneseq
  %v27 = vand.u32 %v26, 127
  %vm28 = vcmp.lt.s32.totalorder %v27, 96
  %v29 = vsel %vm28, 0, %v25
  %30 = vrot.lane.b32.xlu0 %v29, 32
  %v31 = vpop.permute.xlu0 %30
  %v32 = vpack.i.bf16 %v31, 0.0
  %s33 = scalar_lea.vmem %s1, 8
  %v34 = vpack.c.bf16 0.0, %v32
  %35 = vst [vmem:[%s33] sm:$0xf] %v34
  %s36 = scalar_lea.vmem %s0, 24
  %v37 = vld [vmem:[%s36] sm:$0xff]
  %v38 = vlaneseq
  %v39 = vand.u32 %v38, 127
  %vm40 = vcmp.lt.s32.totalorder %v39, 96
  %v41 = vsel %vm40, 0, %v37
  %42 = vrot.lane.b32.xlu0 %v41, 32
  %v43 = vpop.permute.xlu0 %42
  %v44 = vpack.i.bf16 %v43, 0.0
  %s45 = scalar_lea.vmem %s1, 12
  %v46 = vpack.c.bf16 0.0, %v44
  %47 = vst [vmem:[%s45] sm:$0xf] %v46

// kernel: split.1
$region0: #{split.1}
  #allocation0 [shape = 'u32[2048]{0}', space=vmem, size = 0x2000, scoped, tag = 'scoped memory for split.1']
  #allocation1 [shape = 'u32[2048]{0}', space=vmem, size = 0x2000, scoped, tag = 'scoped memory for split.1']
  #allocation2 [shape = 'u32[2048]{0}', space=vmem, size = 0x2000, scoped, tag = 'scoped memory for split.1']
  #allocation3 [shape = 'u32[2048]{0}', space=vmem, size = 0x2000, scoped, tag = 'scoped memory for split.1']
  #allocation4 [shape = 'u32[2048]{0}', space=vmem, size = 0x2000, scoped, tag = 'scoped memory for split.1']
  #allocation5 [shape = 's32[1]{0}', space=sflag, size = 0x4, scoped, tag = 'scoped memory for split.1']
  %s0 = inlined_call_operand.vmem [shape: bf16[32,128], index: 0, kind: input, shape index: {}]
  %s1 = inlined_call_operand.vmem [shape: bf16[32,32], index: 1, kind: output, shape index: {}]
  %v2 = vld [vmem:[%s0] sm:$0xf]
  %v3 = vunpack.c.l.bf16 %v2
  %v4 = vunpack.c.h.bf16 %v2
  %v5 = vlaneseq
  %v6 = vand.u32 %v5, 127
  %vm7 = vcmp.lt.s32.totalorder %v6, 96
  %v8 = vsel %vm7, 0, %v3
  %9 = vrot.lane.b32.xlu0 %v8, 32
  %v10 = vpop.permute.xlu0 %9
  %v11 = vpack.c.bf16 0.0, %v10
  %12 = vst [vmem:[%s1] sm:$0xf] %v11
  %s13 = scalar_lea.vmem %s0, 4
  %v14 = vld [vmem:[%s13] sm:$0xf]
  %v15 = vunpack.c.l.bf16 %v14
  %v16 = vunpack.c.h.bf16 %v14
  %v17 = vlaneseq
  %v18 = vand.u32 %v17, 127
  %vm19 = vcmp.lt.s32.totalorder %v18, 96
  %v20 = vsel %vm19, 0, %v15
  %21 = vrot.lane.b32.xlu0 %v20, 32
  %v22 = vpop.permute.xlu0 %21
  %s23 = scalar_lea.vmem %s1, 4
  %v24 = vpack.c.bf16 0.0, %v22
  %25 = vst [vmem:[%s23] sm:$0xf] %v24
  %s26 = scalar_lea.vmem %s0, 8
  %v27 = vld [vmem:[%s26] sm:$0xf]
  %v28 = vunpack.c.l.bf16 %v27
  %v29 = vunpack.c.h.bf16 %v27
  %v30 = vlaneseq
  %v31 = vand.u32 %v30, 127
  %vm32 = vcmp.lt.s32.totalorder %v31, 96
  %v33 = vsel %vm32, 0, %v28
  %34 = vrot.lane.b32.xlu0 %v33, 32
  %v35 = vpop.permute.xlu0 %34
  %s36 = scalar_lea.vmem %s1, 8
  %v37 = vpack.c.bf16 0.0, %v35
  %38 = vst [vmem:[%s36] sm:$0xf] %v37
  %s39 = scalar_lea.vmem %s0, 12
  %v40 = vld [vmem:[%s39] sm:$0xf]
  %v41 = vunpack.c.l.bf16 %v40
  %v42 = vunpack.c.h.bf16 %v40
  %v43 = vlaneseq
  %v44 = vand.u32 %v43, 127
  %vm45 = vcmp.lt.s32.totalorder %v44, 96
  %v46 = vsel %vm45, 0, %v41
  %47 = vrot.lane.b32.xlu0 %v46, 32
  %v48 = vpop.permute.xlu0 %47
  %s49 = scalar_lea.vmem %s1, 12
  %v50 = vpack.c.bf16 0.0, %v48
  %51 = vst [vmem:[%s49] sm:$0xf] %v50

// kernel: split.27
$region0: #{split.27}
  #allocation0 [shape = 'u32[2048]{0}', space=vmem, size = 0x2000, scoped, tag = 'scoped memory for split.27']
  #allocation1 [shape = 'u32[2048]{0}', space=vmem, size = 0x2000, scoped, tag = 'scoped memory for split.27']
  #allocation2 [shape = 'u32[2048]{0}', space=vmem, size = 0x2000, scoped, tag = 'scoped memory for split.27']
  #allocation3 [shape = 'u32[2048]{0}', space=vmem, size = 0x2000, scoped, tag = 'scoped memory for split.27']
  #allocation4 [shape = 'u32[2048]{0}', space=vmem, size = 0x2000, scoped, tag = 'scoped memory for split.27']
  #allocation5 [shape = 's32[1]{0}', space=sflag, size = 0x4, scoped, tag = 'scoped memory for split.27']
  %s0 = inlined_call_operand.vmem [shape: f32[16,128], index: 0, kind: input, shape index: {}]
  %s1 = inlined_call_operand.vmem [shape: f32[16,32], index: 1, kind: output, shape index: {}]
  %v2 = vld [vmem:[%s0] sm:$0xff]
  %v3 = vlaneseq
  %v4 = vand.u32 %v3, 127
  %vm5 = vcmp.lt.s32.totalorder %v4, 96
  %v6 = vsel %vm5, 0, %v2
  %7 = vrot.lane.b32.xlu0 %v6, 32
  %v8 = vpop.permute.xlu0 %7
  %9 = vst [vmem:[%s1] sm:$0xff] %v8
  %s10 = scalar_lea.vmem %s0, 8
  %v11 = vld [vmem:[%s10] sm:$0xff]
  %v12 = vlaneseq
  %v13 = vand.u32 %v12, 127
  %vm14 = vcmp.lt.s32.totalorder %v13, 96
  %v15 = vsel %vm14, 0, %v11
  %16 = vrot.lane.b32.xlu0 %v15, 32
  %v17 = vpop.permute.xlu0 %16
  %s18 = scalar_lea.vmem %s1, 8
  %19 = vst [vmem:[%s18] sm:$0xff] %v17

// kernel: split.35
$region0: #{split.35}
  #allocation0 [shape = 'u32[2048]{0}', space=vmem, size = 0x2000, scoped, tag = 'scoped memory for split.35']
  #allocation1 [shape = 'u32[2048]{0}', space=vmem, size = 0x2000, scoped, tag = 'scoped memory for split.35']
  #allocation2 [shape = 'u32[2048]{0}', space=vmem, size = 0x2000, scoped, tag = 'scoped memory for split.35']
  #allocation3 [shape = 'u32[2048]{0}', space=vmem, size = 0x2000, scoped, tag = 'scoped memory for split.35']
  #allocation4 [shape = 'u32[2048]{0}', space=vmem, size = 0x2000, scoped, tag = 'scoped memory for split.35']
  #allocation5 [shape = 's32[1]{0}', space=sflag, size = 0x4, scoped, tag = 'scoped memory for split.35']
  %s0 = inlined_call_operand.vmem [shape: f32[1,128], index: 0, kind: input, shape index: {}]
  %s1 = inlined_call_operand.vmem [shape: f32[1,32], index: 1, kind: output, shape index: {}]
  %v2 = vld [vmem:[%s0] sm:$0x1]
  %v3 = vlaneseq
  %v4 = vand.u32 %v3, 127
  %vm5 = vcmp.lt.s32.totalorder %v4, 96
  %v6 = vsel %vm5, 0, %v2
  %7 = vrot.lane.b32.xlu0 %v6, 32
  %v8 = vpop.permute.xlu0 %7
  %9 = vst [vmem:[%s1] sm:$0x1] %v8

// kernel: lstm_forward.1
$region0: #{lstm_forward.1}
  #allocation0 [shape = 'u32[]', space=smem, size = 0x4, offset = 0x4, fixed_abs, tag = 'smem constant byte address 0x4 - core index']
  #allocation1 [shape = 'u32[144,128]{1,0:T(1,128)}', space=vmem, size = 0x12000, scoped, tag = 'internal scratch']
  %s0 = inlined_call_operand.vmem [shape: f32[16,128], index: 0, kind: input, shape index: {}]
  %s1 = inlined_call_operand.vmem [shape: bf16[128,128], index: 1, kind: input, shape index: {}]
  %s2 = inlined_call_operand.vmem [shape: bf16[128,128], index: 2, kind: input, shape index: {}]
  %s3 = inlined_call_operand.vmem [shape: f32[1,128], index: 3, kind: input, shape index: {}]
  %s4 = inlined_call_operand.vmem [shape: f32[2,128], index: 4, kind: output, shape index: {}]
  %s5 = sld [smem:[#allocation0]]
  $region26: #{lstm_forward.1} parent=0
    _
  %s7 = ssub.s32 1, %s5
  %s8 = scalar_select 0, %s7, %s5
  // Predicated region
  $region2: #{lstm_forward.1} parent=0 // pred_check
    _
  $region3: #{lstm_forward.1} parent=0 // pred_check_branch
    %10 = sbr.rel (0) target = $region5
  $region4: #{lstm_forward.1} parent=0 // pred_region
    _
  $region5: #{lstm_forward.1} parent=0 // pred_fallthru
    _
  // Predicated region
  $region6: #{lstm_forward.1} parent=0 // pred_check
    _
  $region7: #{lstm_forward.1} parent=0 // pred_check_branch
    %12 = sbr.rel (0) target = $region9
  $region8: #{lstm_forward.1} parent=0 // pred_region
    _
  $region9: #{lstm_forward.1} parent=0 // pred_fallthru
    _
  // Predicated region
  $region10: #{lstm_forward.1} parent=0 // pred_check
    _
  $region11: #{lstm_forward.1} parent=0 // pred_check_branch
    %14 = sbr.rel (0) target = $region13
  $region12: #{lstm_forward.1} parent=0 // pred_region
    _
  $region13: #{lstm_forward.1} parent=0 // pred_fallthru
    _
  // Predicated region
  $region14: #{lstm_forward.1} parent=0 // pred_check
    _
  $region15: #{lstm_forward.1} parent=0 // pred_check_branch
    %16 = sbr.rel (0) target = $region17
  $region16: #{lstm_forward.1} parent=0 // pred_region
    _
  $region17: #{lstm_forward.1} parent=0 // pred_fallthru
    _
  %v18 = vld [vmem:[%s1] sm:$0xf]
  %v19 = vld [vmem:[%s1 + $0x4] sm:$0xf]
  %v20 = vld [vmem:[%s1 + $0x8] sm:$0xf]
  %v21 = vld [vmem:[%s1 + $0xc] sm:$0xf]
  %v22 = vld [vmem:[%s1 + $0x10] sm:$0xf]
  %v23 = vld [vmem:[%s1 + $0x14] sm:$0xf]
  %v24 = vld [vmem:[%s1 + $0x18] sm:$0xf]
  %v25 = vld [vmem:[%s1 + $0x1c] sm:$0xf]
  %v26 = vld [vmem:[%s1 + $0x20] sm:$0xf]
  %v27 = vld [vmem:[%s1 + $0x24] sm:$0xf]
  %v28 = vld [vmem:[%s1 + $0x28] sm:$0xf]
  %v29 = vld [vmem:[%s1 + $0x2c] sm:$0xf]
  %v30 = vld [vmem:[%s1 + $0x30] sm:$0xf]
  %v31 = vld [vmem:[%s1 + $0x34] sm:$0xf]
  %v32 = vld [vmem:[%s1 + $0x38] sm:$0xf]
  %v33 = vld [vmem:[%s1 + $0x3c] sm:$0xf]
  %v34 = vld [vmem:[%s2] sm:$0xf]
  %v35 = vld [vmem:[%s2 + $0x4] sm:$0xf]
  %v36 = vld [vmem:[%s2 + $0x8] sm:$0xf]
  %v37 = vld [vmem:[%s2 + $0xc] sm:$0xf]
  %v38 = vld [vmem:[%s2 + $0x10] sm:$0xf]
  %v39 = vld [vmem:[%s2 + $0x14] sm:$0xf]
  %v40 = vld [vmem:[%s2 + $0x18] sm:$0xf]
  %v41 = vld [vmem:[%s2 + $0x1c] sm:$0xf]
  %v42 = vld [vmem:[%s2 + $0x20] sm:$0xf]
  %v43 = vld [vmem:[%s2 + $0x24] sm:$0xf]
  %v44 = vld [vmem:[%s2 + $0x28] sm:$0xf]
  %v45 = vld [vmem:[%s2 + $0x2c] sm:$0xf]
  %v46 = vld [vmem:[%s2 + $0x30] sm:$0xf]
  %v47 = vld [vmem:[%s2 + $0x34] sm:$0xf]
  %v48 = vld [vmem:[%s2 + $0x38] sm:$0xf]
  %v49 = vld [vmem:[%s2 + $0x3c] sm:$0xf]
  %v50 = vld [vmem:[%s3] sm:$0x1]
  %v52 = vlaneseq
  %v53 = vshrl.u32 %v52, 7
  %v54 = vsub.s32 0, %v53
  %v55 = vrot.slane %v50, %v54
  %v57 = vlaneseq
  %v58 = vand.u32 %v57, 127
  %vm59 = vcmp.ge.s32.totalorder %v58, 96
  %vm60 = vcmp.lt.s32.totalorder %v58, 32
  %v61 = vld [vmem:[%s0] sm:$0x3]
  %v78 = vunpack.c.l.b16 %v18
  %v79 = vunpack.c.l.b16 %v19
  %v80 = vunpack.c.l.b16 %v20
  %v81 = vunpack.c.l.b16 %v21
  %v82 = vunpack.c.l.b16 %v22
  %v83 = vunpack.c.l.b16 %v23
  %v84 = vunpack.c.l.b16 %v24
  %v85 = vunpack.c.l.b16 %v25
  %v86 = vunpack.c.l.b16 %v26
  %v87 = vunpack.c.l.b16 %v27
  %v88 = vunpack.c.l.b16 %v28
  %v89 = vunpack.c.l.b16 %v29
  %v90 = vunpack.c.l.b16 %v30
  %v91 = vunpack.c.l.b16 %v31
  %v92 = vunpack.c.l.b16 %v32
  %v93 = vunpack.c.l.b16 %v33
  %v94 = vpack.c.b16 %v79, %v78
  %v95 = vpack.c.b16 %v81, %v80
  %v96 = vpack.c.b16 %v83, %v82
  %v97 = vpack.c.b16 %v85, %v84
  %v98 = vpack.c.b16 %v87, %v86
  %v99 = vpack.c.b16 %v89, %v88
  %v100 = vpack.c.b16 %v91, %v90
  %v101 = vpack.c.b16 %v93, %v92
  %110 = vmatprep.subr.bf16.mxu0 0
  %111 = vmatpush1.bf16.msra.mxu0 %v94
  %112 = vmatprep.subr.bf16.mxu0 0
  %113 = vmatpush1.bf16.msra.mxu0 %v95
  %114 = vmatprep.subr.bf16.mxu0 0
  %115 = vmatpush1.bf16.msra.mxu0 %v96
  %116 = vmatprep.subr.bf16.mxu0 0
  %117 = vmatpush1.bf16.msra.mxu0 %v97
  %118 = vmatprep.subr.bf16.mxu0 0
  %119 = vmatpush1.bf16.msra.mxu0 %v98
  %120 = vmatprep.subr.bf16.mxu0 0
  %121 = vmatpush1.bf16.msra.mxu0 %v99
  %122 = vmatprep.subr.bf16.mxu0 0
  %123 = vmatpush1.bf16.msra.mxu0 %v100
  %124 = vmatprep.subr.bf16.mxu0 0
  %125 = vmatpush1.bf16.msra.mxu0 %v101
  %126 = vmatprep.subr.bf16.mxu0 0
  %127 = vmatpush1.bf16.msra.mxu0 0
  %128 = vmatprep.subr.bf16.mxu0 0
  %129 = vmatpush1.bf16.msra.mxu0 0
  %130 = vmatprep.subr.bf16.mxu0 0
  %131 = vmatpush1.bf16.msra.mxu0 0
  %132 = vmatprep.subr.bf16.mxu0 0
  %133 = vmatpush1.bf16.msra.mxu0 0
  %134 = vmatprep.subr.bf16.mxu0 0
  %135 = vmatpush1.bf16.msra.mxu0 0
  %136 = vmatprep.subr.bf16.mxu0 0
  %137 = vmatpush1.bf16.msra.mxu0 0
  %138 = vmatprep.subr.bf16.mxu0 0
  %139 = vmatpush1.bf16.msra.mxu0 0
  %140 = vmatprep.subr.bf16.mxu0 0
  %141 = vmatpush1.bf16.msra.mxu0 0
  %142 = vmatprep.mubr.bf16.mxu0 0
  %143 = vmatmul.mubr.bf16.gmra.mrb[0].mxu0 0
  %v144 = vpop.f32.mrb[0].mxu0
  %v145 = vadd.f32 0.0, %v144
  %v146 = vpop.f32.mrb[0].mxu0
  %v147 = vpop.f32.mrb[0].mxu0
  %v148 = vpop.f32.mrb[0].mxu0
  %149 = vdwg.mxu0
  %v150 = vadd.f32 %v61, %v145
  %v151 = vmul.f32 %v150, 0.5
  %v152 = vsel %vm59, %v150, %v151
  %v153 = vtanh.pop %v152
  %v154 = vmul.f32 %v153, 0.5
  %v155 = vadd.f32 %v154, 0.5
  %v156 = vsel %vm59, %v153, %v155
  %157 = vrot.lane.b32.xlu0 %v156, 32
  %v158 = vpop.permute.xlu0 %157
  %159 = vrot.lane.b32.xlu0 %v156, 64
  %v160 = vpop.permute.xlu0 %159
  %161 = vrot.lane.b32.xlu0 %v156, 96
  %v162 = vpop.permute.xlu0 %161
  %v163 = vmul.f32 %v160, 0.0
  %v164 = vmul.f32 %v158, %v162
  %v165 = vadd.f32 %v163, %v164
  %v166 = vtanh.pop %v165
  %v167 = vmul.f32 %v156, %v166
  %168 = vrot.lane.b32.xlu0 0.0, 32
  %v169 = vpop.permute.xlu0 %168
  %v170 = vsel %vm60, %v167, %v169
  %v171 = vpack.c.bf16 %v170, %v170
  %v188 = vunpack.c.l.b16 %v34
  %v189 = vunpack.c.l.b16 %v35
  %v190 = vunpack.c.l.b16 %v36
  %v191 = vunpack.c.l.b16 %v37
  %v192 = vunpack.c.l.b16 %v38
  %v193 = vunpack.c.l.b16 %v39
  %v194 = vunpack.c.l.b16 %v40
  %v195 = vunpack.c.l.b16 %v41
  %v196 = vunpack.c.l.b16 %v42
  %v197 = vunpack.c.l.b16 %v43
  %v198 = vunpack.c.l.b16 %v44
  %v199 = vunpack.c.l.b16 %v45
  %v200 = vunpack.c.l.b16 %v46
  %v201 = vunpack.c.l.b16 %v47
  %v202 = vunpack.c.l.b16 %v48
  %v203 = vunpack.c.l.b16 %v49
  %v204 = vpack.c.b16 %v189, %v188
  %v205 = vpack.c.b16 %v191, %v190
  %v206 = vpack.c.b16 %v193, %v192
  %v207 = vpack.c.b16 %v195, %v194
  %v208 = vpack.c.b16 %v197, %v196
  %v209 = vpack.c.b16 %v199, %v198
  %v210 = vpack.c.b16 %v201, %v200
  %v211 = vpack.c.b16 %v203, %v202
  %220 = vmatprep.subr.bf16.mxu0 0
  %221 = vmatpush1.bf16.msra.mxu0 %v204
  %222 = vmatprep.subr.bf16.mxu0 0
  %223 = vmatpush1.bf16.msra.mxu0 %v205
  %224 = vmatprep.subr.bf16.mxu0 0
  %225 = vmatpush1.bf16.msra.mxu0 %v206
  %226 = vmatprep.subr.bf16.mxu0 0
  %227 = vmatpush1.bf16.msra.mxu0 %v207
  %228 = vmatprep.subr.bf16.mxu0 0
  %229 = vmatpush1.bf16.msra.mxu0 %v208
  %230 = vmatprep.subr.bf16.mxu0 0
  %231 = vmatpush1.bf16.msra.mxu0 %v209
  %232 = vmatprep.subr.bf16.mxu0 0
  %233 = vmatpush1.bf16.msra.mxu0 %v210
  %234 = vmatprep.subr.bf16.mxu0 0
  %235 = vmatpush1.bf16.msra.mxu0 %v211
  %236 = vmatprep.subr.bf16.mxu0 0
  %237 = vmatpush1.bf16.msra.mxu0 0
  %238 = vmatprep.subr.bf16.mxu0 0
  %239 = vmatpush1.bf16.msra.mxu0 0
  %240 = vmatprep.subr.bf16.mxu0 0
  %241 = vmatpush1.bf16.msra.mxu0 0
  %242 = vmatprep.subr.bf16.mxu0 0
  %243 = vmatpush1.bf16.msra.mxu0 0
  %244 = vmatprep.subr.bf16.mxu0 0
  %245 = vmatpush1.bf16.msra.mxu0 0
  %246 = vmatprep.subr.bf16.mxu0 0
  %247 = vmatpush1.bf16.msra.mxu0 0
  %248 = vmatprep.subr.bf16.mxu0 0
  %249 = vmatpush1.bf16.msra.mxu0 0
  %250 = vmatprep.subr.bf16.mxu0 0
  %251 = vmatpush1.bf16.msra.mxu0 0
  %252 = vmatprep.mubr.bf16.mxu0 0
  %253 = vmatmul.mubr.bf16.gmra.mrb[0].mxu0 %v171
  %v254 = vpop.f32.mrb[0].mxu0
  %v255 = vadd.f32 %v55, %v254
  %v256 = vpop.f32.mrb[0].mxu0
  %v257 = vpop.f32.mrb[0].mxu0
  %v258 = vpop.f32.mrb[0].mxu0
  %259 = vdwg.mxu0
  %v260 = vmul.f32 %v255, 0.5
  %v261 = vsel %vm59, %v255, %v260
  %v262 = vtanh.pop %v261
  %v263 = vmul.f32 %v262, 0.5
  %v264 = vadd.f32 %v263, 0.5
  %v265 = vsel %vm59, %v262, %v264
  %266 = vrot.lane.b32.xlu0 %v265, 32
  %v267 = vpop.permute.xlu0 %266
  %268 = vrot.lane.b32.xlu0 %v265, 64
  %v269 = vpop.permute.xlu0 %268
  %270 = vrot.lane.b32.xlu0 %v265, 96
  %v271 = vpop.permute.xlu0 %270
  %v272 = vmul.f32 %v269, 0.0
  %v273 = vmul.f32 %v267, %v271
  %v274 = vadd.f32 %v272, %v273
  %v275 = vtanh.pop %v274
  %v276 = vmul.f32 %v265, %v275
  %s277 = scalar_lea.vmem %s0, 2
  %v278 = vld [vmem:[%s277] sm:$0x3]
  %v279 = vpack.c.bf16 %v167, %v167
  %280 = vmatprep.subr.bf16.mxu0 0
  %281 = vmatpush1.bf16.msra.mxu0 %v94
  %282 = vmatprep.subr.bf16.mxu0 0
  %283 = vmatpush1.bf16.msra.mxu0 %v95
  %284 = vmatprep.subr.bf16.mxu0 0
  %285 = vmatpush1.bf16.msra.mxu0 %v96
  %286 = vmatprep.subr.bf16.mxu0 0
  %287 = vmatpush1.bf16.msra.mxu0 %v97
  %288 = vmatprep.subr.bf16.mxu0 0
  %289 = vmatpush1.bf16.msra.mxu0 %v98
  %290 = vmatprep.subr.bf16.mxu0 0
  %291 = vmatpush1.bf16.msra.mxu0 %v99
  %292 = vmatprep.subr.bf16.mxu0 0
  %293 = vmatpush1.bf16.msra.mxu0 %v100
  %294 = vmatprep.subr.bf16.mxu0 0
  %295 = vmatpush1.bf16.msra.mxu0 %v101
  %296 = vmatprep.subr.bf16.mxu0 0
  %297 = vmatpush1.bf16.msra.mxu0 0
  %298 = vmatprep.subr.bf16.mxu0 0
  %299 = vmatpush1.bf16.msra.mxu0 0
  %300 = vmatprep.subr.bf16.mxu0 0
  %301 = vmatpush1.bf16.msra.mxu0 0
  %302 = vmatprep.subr.bf16.mxu0 0
  %303 = vmatpush1.bf16.msra.mxu0 0
  %304 = vmatprep.subr.bf16.mxu0 0
  %305 = vmatpush1.bf16.msra.mxu0 0
  %306 = vmatprep.subr.bf16.mxu0 0
  %307 = vmatpush1.bf16.msra.mxu0 0
  %308 = vmatprep.subr.bf16.mxu0 0
  %309 = vmatpush1.bf16.msra.mxu0 0
  %310 = vmatprep.subr.bf16.mxu0 0
  %311 = vmatpush1.bf16.msra.mxu0 0
  %312 = vmatprep.mubr.bf16.mxu0 0
  %313 = vmatmul.mubr.bf16.gmra.mrb[0].mxu0 %v279
  %v314 = vpop.f32.mrb[0].mxu0
  %v315 = vadd.f32 0.0, %v314
  %v316 = vpop.f32.mrb[0].mxu0
  %v317 = vpop.f32.mrb[0].mxu0
  %v318 = vpop.f32.mrb[0].mxu0
  %319 = vdwg.mxu0
  %v320 = vadd.f32 %v278, %v315
  %v321 = vmul.f32 %v320, 0.5
  %v322 = vsel %vm59, %v320, %v321
  %v323 = vtanh.pop %v322
  %v324 = vmul.f32 %v323, 0.5
  %v325 = vadd.f32 %v324, 0.5
  %v326 = vsel %vm59, %v323, %v325
  %327 = vrot.lane.b32.xlu0 %v326, 32
  %v328 = vpop.permute.xlu0 %327
  %329 = vrot.lane.b32.xlu0 %v326, 64
  %v330 = vpop.permute.xlu0 %329
  %331 = vrot.lane.b32.xlu0 %v326, 96
  %v332 = vpop.permute.xlu0 %331
  %v333 = vmul.f32 %v330, %v165
  %v334 = vmul.f32 %v328, %v332
  %v335 = vadd.f32 %v333, %v334
  %v336 = vtanh.pop %v335
  %v337 = vmul.f32 %v326, %v336
  %v338 = vsel %vm60, %v276, 0.0
  %339 = vrot.lane.b32.xlu0 %v338, 32
  %v340 = vpop.permute.xlu0 %339
  %v341 = vsel %vm60, %v337, %v340
  %v342 = vpack.c.bf16 %v341, %v341
  %343 = vmatprep.subr.bf16.mxu0 0
  %344 = vmatpush1.bf16.msra.mxu0 %v204
  %345 = vmatprep.subr.bf16.mxu0 0
  %346 = vmatpush1.bf16.msra.mxu0 %v205
  %347 = vmatprep.subr.bf16.mxu0 0
  %348 = vmatpush1.bf16.msra.mxu0 %v206
  %349 = vmatprep.subr.bf16.mxu0 0
  %350 = vmatpush1.bf16.msra.mxu0 %v207
  %351 = vmatprep.subr.bf16.mxu0 0
  %352 = vmatpush1.bf16.msra.mxu0 %v208
  %353 = vmatprep.subr.bf16.mxu0 0
  %354 = vmatpush1.bf16.msra.mxu0 %v209
  %355 = vmatprep.subr.bf16.mxu0 0
  %356 = vmatpush1.bf16.msra.mxu0 %v210
  %357 = vmatprep.subr.bf16.mxu0 0
  %358 = vmatpush1.bf16.msra.mxu0 %v211
  %359 = vmatprep.subr.bf16.mxu0 0
  %360 = vmatpush1.bf16.msra.mxu0 0
  %361 = vmatprep.subr.bf16.mxu0 0
  %362 = vmatpush1.bf16.msra.mxu0 0
  %363 = vmatprep.subr.bf16.mxu0 0
  %364 = vmatpush1.bf16.msra.mxu0 0
  %365 = vmatprep.subr.bf16.mxu0 0
  %366 = vmatpush1.bf16.msra.mxu0 0
  %367 = vmatprep.subr.bf16.mxu0 0
  %368 = vmatpush1.bf16.msra.mxu0 0
  %369 = vmatprep.subr.bf16.mxu0 0
  %370 = vmatpush1.bf16.msra.mxu0 0
  %371 = vmatprep.subr.bf16.mxu0 0
  %372 = vmatpush1.bf16.msra.mxu0 0
  %373 = vmatprep.subr.bf16.mxu0 0
  %374 = vmatpush1.bf16.msra.mxu0 0
  %375 = vmatprep.mubr.bf16.mxu0 0
  %376 = vmatmul.mubr.bf16.gmra.mrb[0].mxu0 %v342
  %v377 = vpop.f32.mrb[0].mxu0
  %v378 = vadd.f32 %v55, %v377
  %v379 = vpop.f32.mrb[0].mxu0
  %v380 = vpop.f32.mrb[0].mxu0
  %v381 = vpop.f32.mrb[0].mxu0
  %382 = vdwg.mxu0
  %v383 = vmul.f32 %v378, 0.5
  %v384 = vsel %vm59, %v378, %v383
  %v385 = vtanh.pop %v384
  %v386 = vmul.f32 %v385, 0.5
  %v387 = vadd.f32 %v386, 0.5
  %v388 = vsel %vm59, %v385, %v387
  %389 = vrot.lane.b32.xlu0 %v388, 32
  %v390 = vpop.permute.xlu0 %389
  %391 = vrot.lane.b32.xlu0 %v388, 64
  %v392 = vpop.permute.xlu0 %391
  %393 = vrot.lane.b32.xlu0 %v388, 96
  %v394 = vpop.permute.xlu0 %393
  %v395 = vmul.f32 %v392, %v274
  %v396 = vmul.f32 %v390, %v394
  %v397 = vadd.f32 %v395, %v396
  %v398 = vtanh.pop %v397
  %v399 = vmul.f32 %v388, %v398
  %s400 = scalar_lea.vmem %s0, 4
  %v401 = vld [vmem:[%s400] sm:$0x3]
  %v402 = vpack.c.bf16 %v337, %v337
  %403 = vmatprep.subr.bf16.mxu0 0
  %404 = vmatpush1.bf16.msra.mxu0 %v94
  %405 = vmatprep.subr.bf16.mxu0 0
  %406 = vmatpush1.bf16.msra.mxu0 %v95
  %407 = vmatprep.subr.bf16.mxu0 0
  %408 = vmatpush1.bf16.msra.mxu0 %v96
  %409 = vmatprep.subr.bf16.mxu0 0
  %410 = vmatpush1.bf16.msra.mxu0 %v97
  %411 = vmatprep.subr.bf16.mxu0 0
  %412 = vmatpush1.bf16.msra.mxu0 %v98
  %413 = vmatprep.subr.bf16.mxu0 0
  %414 = vmatpush1.bf16.msra.mxu0 %v99
  %415 = vmatprep.subr.bf16.mxu0 0
  %416 = vmatpush1.bf16.msra.mxu0 %v100
  %417 = vmatprep.subr.bf16.mxu0 0
  %418 = vmatpush1.bf16.msra.mxu0 %v101
  %419 = vmatprep.subr.bf16.mxu0 0
  %420 = vmatpush1.bf16.msra.mxu0 0
  %421 = vmatprep.subr.bf16.mxu0 0
  %422 = vmatpush1.bf16.msra.mxu0 0
  %423 = vmatprep.subr.bf16.mxu0 0
  %424 = vmatpush1.bf16.msra.mxu0 0
  %425 = vmatprep.subr.bf16.mxu0 0
  %426 = vmatpush1.bf16.msra.mxu0 0
  %427 = vmatprep.subr.bf16.mxu0 0
  %428 = vmatpush1.bf16.msra.mxu0 0
  %429 = vmatprep.subr.bf16.mxu0 0
  %430 = vmatpush1.bf16.msra.mxu0 0
  %431 = vmatprep.subr.bf16.mxu0 0
  %432 = vmatpush1.bf16.msra.mxu0 0
  %433 = vmatprep.subr.bf16.mxu0 0
  %434 = vmatpush1.bf16.msra.mxu0 0
  %435 = vmatprep.mubr.bf16.mxu0 0
  %436 = vmatmul.mubr.bf16.gmra.mrb[0].mxu0 %v402
  %v437 = vpop.f32.mrb[0].mxu0
  %v438 = vadd.f32 0.0, %v437
  %v439 = vpop.f32.mrb[0].mxu0
  %v440 = vpop.f32.mrb[0].mxu0
  %v441 = vpop.f32.mrb[0].mxu0
  %442 = vdwg.mxu0
  %v443 = vadd.f32 %v401, %v438
  %v444 = vmul.f32 %v443, 0.5
  %v445 = vsel %vm59, %v443, %v444
  %v446 = vtanh.pop %v445
  %v447 = vmul.f32 %v446, 0.5
  %v448 = vadd.f32 %v447, 0.5
  %v449 = vsel %vm59, %v446, %v448
  %450 = vrot.lane.b32.xlu0 %v449, 32
  %v451 = vpop.permute.xlu0 %450
  %452 = vrot.lane.b32.xlu0 %v449, 64
  %v453 = vpop.permute.xlu0 %452
  %454 = vrot.lane.b32.xlu0 %v449, 96
  %v455 = vpop.permute.xlu0 %454
  %v456 = vmul.f32 %v453, %v335
  %v457 = vmul.f32 %v451, %v455
  %v458 = vadd.f32 %v456, %v457
  %v459 = vtanh.pop %v458
  %v460 = vmul.f32 %v449, %v459
  %v461 = vsel %vm60, %v399, 0.0
  %462 = vrot.lane.b32.xlu0 %v461, 32
  %v463 = vpop.permute.xlu0 %462
  %v464 = vsel %vm60, %v460, %v463
  %v465 = vpack.c.bf16 %v464, %v464
  %466 = vmatprep.subr.bf16.mxu0 0
  %467 = vmatpush1.bf16.msra.mxu0 %v204
  %468 = vmatprep.subr.bf16.mxu0 0
  %469 = vmatpush1.bf16.msra.mxu0 %v205
  %470 = vmatprep.subr.bf16.mxu0 0
  %471 = vmatpush1.bf16.msra.mxu0 %v206
  %472 = vmatprep.subr.bf16.mxu0 0
  %473 = vmatpush1.bf16.msra.mxu0 %v207
  %474 = vmatprep.subr.bf16.mxu0 0
  %475 = vmatpush1.bf16.msra.mxu0 %v208
  %476 = vmatprep.subr.bf16.mxu0 0
  %477 = vmatpush1.bf16.msra.mxu0 %v209
  %478 = vmatprep.subr.bf16.mxu0 0
  %479 = vmatpush1.bf16.msra.mxu0 %v210
  %480 = vmatprep.subr.bf16.mxu0 0
  %481 = vmatpush1.bf16.msra.mxu0 %v211
  %482 = vmatprep.subr.bf16.mxu0 0
  %483 = vmatpush1.bf16.msra.mxu0 0
  %484 = vmatprep.subr.bf16.mxu0 0
  %485 = vmatpush1.bf16.msra.mxu0 0
  %486 = vmatprep.subr.bf16.mxu0 0
  %487 = vmatpush1.bf16.msra.mxu0 0
  %488 = vmatprep.subr.bf16.mxu0 0
  %489 = vmatpush1.bf16.msra.mxu0 0
  %490 = vmatprep.subr.bf16.mxu0 0
  %491 = vmatpush1.bf16.msra.mxu0 0
  %492 = vmatprep.subr.bf16.mxu0 0
  %493 = vmatpush1.bf16.msra.mxu0 0
  %494 = vmatprep.subr.bf16.mxu0 0
  %495 = vmatpush1.bf16.msra.mxu0 0
  %496 = vmatprep.subr.bf16.mxu0 0
  %497 = vmatpush1.bf16.msra.mxu0 0
  %498 = vmatprep.mubr.bf16.mxu0 0
  %499 = vmatmul.mubr.bf16.gmra.mrb[0].mxu0 %v465
  %v500 = vpop.f32.mrb[0].mxu0
  %v501 = vadd.f32 %v55, %v500
  %v502 = vpop.f32.mrb[0].mxu0
  %v503 = vpop.f32.mrb[0].mxu0
  %v504 = vpop.f32.mrb[0].mxu0
  %505 = vdwg.mxu0
  %v506 = vmul.f32 %v501, 0.5
  %v507 = vsel %vm59, %v501, %v506
  %v508 = vtanh.pop %v507
  %v509 = vmul.f32 %v508, 0.5
  %v510 = vadd.f32 %v509, 0.5
  %v511 = vsel %vm59, %v508, %v510
  %512 = vrot.lane.b32.xlu0 %v511, 32
  %v513 = vpop.permute.xlu0 %512
  %514 = vrot.lane.b32.xlu0 %v511, 64
  %v515 = vpop.permute.xlu0 %514
  %516 = vrot.lane.b32.xlu0 %v511, 96
  %v517 = vpop.permute.xlu0 %516
  %v518 = vmul.f32 %v515, %v397
  %v519 = vmul.f32 %v513, %v517
  %v520 = vadd.f32 %v518, %v519
  %v521 = vtanh.pop %v520
  %v522 = vmul.f32 %v511, %v521
  %s523 = scalar_lea.vmem %s0, 6
  %v524 = vld [vmem:[%s523] sm:$0x3]
  %v525 = vpack.c.bf16 %v460, %v460
  %526 = vmatprep.subr.bf16.mxu0 0
  %527 = vmatpush1.bf16.msra.mxu0 %v94
  %528 = vmatprep.subr.bf16.mxu0 0
  %529 = vmatpush1.bf16.msra.mxu0 %v95
  %530 = vmatprep.subr.bf16.mxu0 0
  %531 = vmatpush1.bf16.msra.mxu0 %v96
  %532 = vmatprep.subr.bf16.mxu0 0
  %533 = vmatpush1.bf16.msra.mxu0 %v97
  %534 = vmatprep.subr.bf16.mxu0 0
  %535 = vmatpush1.bf16.msra.mxu0 %v98
  %536 = vmatprep.subr.bf16.mxu0 0
  %537 = vmatpush1.bf16.msra.mxu0 %v99
  %538 = vmatprep.subr.bf16.mxu0 0
  %539 = vmatpush1.bf16.msra.mxu0 %v100
  %540 = vmatprep.subr.bf16.mxu0 0
  %541 = vmatpush1.bf16.msra.mxu0 %v101
  %542 = vmatprep.subr.bf16.mxu0 0
  %543 = vmatpush1.bf16.msra.mxu0 0
  %544 = vmatprep.subr.bf16.mxu0 0
  %545 = vmatpush1.bf16.msra.mxu0 0
  %546 = vmatprep.subr.bf16.mxu0 0
  %547 = vmatpush1.bf16.msra.mxu0 0
  %548 = vmatprep.subr.bf16.mxu0 0
  %549 = vmatpush1.bf16.msra.mxu0 0
  %550 = vmatprep.subr.bf16.mxu0 0
  %551 = vmatpush1.bf16.msra.mxu0 0
  %552 = vmatprep.subr.bf16.mxu0 0
  %553 = vmatpush1.bf16.msra.mxu0 0
  %554 = vmatprep.subr.bf16.mxu0 0
  %555 = vmatpush1.bf16.msra.mxu0 0
  %556 = vmatprep.subr.bf16.mxu0 0
  %557 = vmatpush1.bf16.msra.mxu0 0
  %558 = vmatprep.mubr.bf16.mxu0 0
  %559 = vmatmul.mubr.bf16.gmra.mrb[0].mxu0 %v525
  %v560 = vpop.f32.mrb[0].mxu0
  %v561 = vadd.f32 0.0, %v560
  %v562 = vpop.f32.mrb[0].mxu0
  %v563 = vpop.f32.mrb[0].mxu0
  %v564 = vpop.f32.mrb[0].mxu0
  %565 = vdwg.mxu0
  %v566 = vadd.f32 %v524, %v561
  %v567 = vmul.f32 %v566, 0.5
  %v568 = vsel %vm59, %v566, %v567
  %v569 = vtanh.pop %v568
  %v570 = vmul.f32 %v569, 0.5
  %v571 = vadd.f32 %v570, 0.5
  %v572 = vsel %vm59, %v569, %v571
  %573 = vrot.lane.b32.xlu0 %v572, 32
  %v574 = vpop.permute.xlu0 %573
  %575 = vrot.lane.b32.xlu0 %v572, 64
  %v576 = vpop.permute.xlu0 %575
  %577 = vrot.lane.b32.xlu0 %v572, 96
  %v578 = vpop.permute.xlu0 %577
  %v579 = vmul.f32 %v576, %v458
  %v580 = vmul.f32 %v574, %v578
  %v581 = vadd.f32 %v579, %v580
  %v582 = vtanh.pop %v581
  %v583 = vmul.f32 %v572, %v582
  %v584 = vsel %vm60, %v522, 0.0
  %585 = vrot.lane.b32.xlu0 %v584, 32
  %v586 = vpop.permute.xlu0 %585
  %v587 = vsel %vm60, %v583, %v586
  %v588 = vpack.c.bf16 %v587, %v587
  %589 = vmatprep.subr.bf16.mxu0 0
  %590 = vmatpush1.bf16.msra.mxu0 %v204
  %591 = vmatprep.subr.bf16.mxu0 0
  %592 = vmatpush1.bf16.msra.mxu0 %v205
  %593 = vmatprep.subr.bf16.mxu0 0
  %594 = vmatpush1.bf16.msra.mxu0 %v206
  %595 = vmatprep.subr.bf16.mxu0 0
  %596 = vmatpush1.bf16.msra.mxu0 %v207
  %597 = vmatprep.subr.bf16.mxu0 0
  %598 = vmatpush1.bf16.msra.mxu0 %v208
  %599 = vmatprep.subr.bf16.mxu0 0
  %600 = vmatpush1.bf16.msra.mxu0 %v209
  %601 = vmatprep.subr.bf16.mxu0 0
  %602 = vmatpush1.bf16.msra.mxu0 %v210
  %603 = vmatprep.subr.bf16.mxu0 0
  %604 = vmatpush1.bf16.msra.mxu0 %v211
  %605 = vmatprep.subr.bf16.mxu0 0
  %606 = vmatpush1.bf16.msra.mxu0 0
  %607 = vmatprep.subr.bf16.mxu0 0
  %608 = vmatpush1.bf16.msra.mxu0 0
  %609 = vmatprep.subr.bf16.mxu0 0
  %610 = vmatpush1.bf16.msra.mxu0 0
  %611 = vmatprep.subr.bf16.mxu0 0
  %612 = vmatpush1.bf16.msra.mxu0 0
  %613 = vmatprep.subr.bf16.mxu0 0
  %614 = vmatpush1.bf16.msra.mxu0 0
  %615 = vmatprep.subr.bf16.mxu0 0
  %616 = vmatpush1.bf16.msra.mxu0 0
  %617 = vmatprep.subr.bf16.mxu0 0
  %618 = vmatpush1.bf16.msra.mxu0 0
  %619 = vmatprep.subr.bf16.mxu0 0
  %620 = vmatpush1.bf16.msra.mxu0 0
  %621 = vmatprep.mubr.bf16.mxu0 0
  %622 = vmatmul.mubr.bf16.gmra.mrb[0].mxu0 %v588
  %v623 = vpop.f32.mrb[0].mxu0
  %v624 = vadd.f32 %v55, %v623
  %v625 = vpop.f32.mrb[0].mxu0
  %v626 = vpop.f32.mrb[0].mxu0
  %v627 = vpop.f32.mrb[0].mxu0
  %628 = vdwg.mxu0
  %v629 = vmul.f32 %v624, 0.5
  %v630 = vsel %vm59, %v624, %v629
  %v631 = vtanh.pop %v630
  %v632 = vmul.f32 %v631, 0.5
  %v633 = vadd.f32 %v632, 0.5
  %v634 = vsel %vm59, %v631, %v633
  %635 = vrot.lane.b32.xlu0 %v634, 32
  %v636 = vpop.permute.xlu0 %635
  %637 = vrot.lane.b32.xlu0 %v634, 64
  %v638 = vpop.permute.xlu0 %637
  %639 = vrot.lane.b32.xlu0 %v634, 96
  %v640 = vpop.permute.xlu0 %639
  %v641 = vmul.f32 %v638, %v520
  %v642 = vmul.f32 %v636, %v640
  %v643 = vadd.f32 %v641, %v642
  %v644 = vtanh.pop %v643
  %v645 = vmul.f32 %v634, %v644
  %s646 = scalar_lea.vmem %s0, 8
  %v647 = vld [vmem:[%s646] sm:$0x3]
  %v648 = vpack.c.bf16 %v583, %v583
  %649 = vmatprep.subr.bf16.mxu0 0
  %650 = vmatpush1.bf16.msra.mxu0 %v94
  %651 = vmatprep.subr.bf16.mxu0 0
  %652 = vmatpush1.bf16.msra.mxu0 %v95
  %653 = vmatprep.subr.bf16.mxu0 0
  %654 = vmatpush1.bf16.msra.mxu0 %v96
  %655 = vmatprep.subr.bf16.mxu0 0
  %656 = vmatpush1.bf16.msra.mxu0 %v97
  %657 = vmatprep.subr.bf16.mxu0 0
  %658 = vmatpush1.bf16.msra.mxu0 %v98
  %659 = vmatprep.subr.bf16.mxu0 0
  %660 = vmatpush1.bf16.msra.mxu0 %v99
  %661 = vmatprep.subr.bf16.mxu0 0
  %662 = vmatpush1.bf16.msra.mxu0 %v100
  %663 = vmatprep.subr.bf16.mxu0 0
  %664 = vmatpush1.bf16.msra.mxu0 %v101
  %665 = vmatprep.subr.bf16.mxu0 0
  %666 = vmatpush1.bf16.msra.mxu0 0
  %667 = vmatprep.subr.bf16.mxu0 0
  %668 = vmatpush1.bf16.msra.mxu0 0
  %669 = vmatprep.subr.bf16.mxu0 0
  %670 = vmatpush1.bf16.msra.mxu0 0
  %671 = vmatprep.subr.bf16.mxu0 0
  %672 = vmatpush1.bf16.msra.mxu0 0
  %673 = vmatprep.subr.bf16.mxu0 0
  %674 = vmatpush1.bf16.msra.mxu0 0
  %675 = vmatprep.subr.bf16.mxu0 0
  %676 = vmatpush1.bf16.msra.mxu0 0
  %677 = vmatprep.subr.bf16.mxu0 0
  %678 = vmatpush1.bf16.msra.mxu0 0
  %679 = vmatprep.subr.bf16.mxu0 0
  %680 = vmatpush1.bf16.msra.mxu0 0
  %681 = vmatprep.mubr.bf16.mxu0 0
  %682 = vmatmul.mubr.bf16.gmra.mrb[0].mxu0 %v648
  %v683 = vpop.f32.mrb[0].mxu0
  %v684 = vadd.f32 0.0, %v683
  %v685 = vpop.f32.mrb[0].mxu0
  %v686 = vpop.f32.mrb[0].mxu0
  %v687 = vpop.f32.mrb[0].mxu0
  %688 = vdwg.mxu0
  %v689 = vadd.f32 %v647, %v684
  %v690 = vmul.f32 %v689, 0.5
  %v691 = vsel %vm59, %v689, %v690
  %v692 = vtanh.pop %v691
  %v693 = vmul.f32 %v692, 0.5
  %v694 = vadd.f32 %v693, 0.5
  %v695 = vsel %vm59, %v692, %v694
  %696 = vrot.lane.b32.xlu0 %v695, 32
  %v697 = vpop.permute.xlu0 %696
  %698 = vrot.lane.b32.xlu0 %v695, 64
  %v699 = vpop.permute.xlu0 %698
  %700 = vrot.lane.b32.xlu0 %v695, 96
  %v701 = vpop.permute.xlu0 %700
  %v702 = vmul.f32 %v699, %v581
  %v703 = vmul.f32 %v697, %v701
  %v704 = vadd.f32 %v702, %v703
  %v705 = vtanh.pop %v704
  %v706 = vmul.f32 %v695, %v705
  %v707 = vsel %vm60, %v645, 0.0
  %708 = vrot.lane.b32.xlu0 %v707, 32
  %v709 = vpop.permute.xlu0 %708
  %v710 = vsel %vm60, %v706, %v709
  %v711 = vpack.c.bf16 %v710, %v710
  %712 = vmatprep.subr.bf16.mxu0 0
  %713 = vmatpush1.bf16.msra.mxu0 %v204
  %714 = vmatprep.subr.bf16.mxu0 0
  %715 = vmatpush1.bf16.msra.mxu0 %v205
  %716 = vmatprep.subr.bf16.mxu0 0
  %717 = vmatpush1.bf16.msra.mxu0 %v206
  %718 = vmatprep.subr.bf16.mxu0 0
  %719 = vmatpush1.bf16.msra.mxu0 %v207
  %720 = vmatprep.subr.bf16.mxu0 0
  %721 = vmatpush1.bf16.msra.mxu0 %v208
  %722 = vmatprep.subr.bf16.mxu0 0
  %723 = vmatpush1.bf16.msra.mxu0 %v209
  %724 = vmatprep.subr.bf16.mxu0 0
  %725 = vmatpush1.bf16.msra.mxu0 %v210
  %726 = vmatprep.subr.bf16.mxu0 0
  %727 = vmatpush1.bf16.msra.mxu0 %v211
  %728 = vmatprep.subr.bf16.mxu0 0
  %729 = vmatpush1.bf16.msra.mxu0 0
  %730 = vmatprep.subr.bf16.mxu0 0
  %731 = vmatpush1.bf16.msra.mxu0 0
  %732 = vmatprep.subr.bf16.mxu0 0
  %733 = vmatpush1.bf16.msra.mxu0 0
  %734 = vmatprep.subr.bf16.mxu0 0
  %735 = vmatpush1.bf16.msra.mxu0 0
  %736 = vmatprep.subr.bf16.mxu0 0
  %737 = vmatpush1.bf16.msra.mxu0 0
  %738 = vmatprep.subr.bf16.mxu0 0
  %739 = vmatpush1.bf16.msra.mxu0 0
  %740 = vmatprep.subr.bf16.mxu0 0
  %741 = vmatpush1.bf16.msra.mxu0 0
  %742 = vmatprep.subr.bf16.mxu0 0
  %743 = vmatpush1.bf16.msra.mxu0 0
  %744 = vmatprep.mubr.bf16.mxu0 0
  %745 = vmatmul.mubr.bf16.gmra.mrb[0].mxu0 %v711
  %v746 = vpop.f32.mrb[0].mxu0
  %v747 = vadd.f32 %v55, %v746
  %v748 = vpop.f32.mrb[0].mxu0
  %v749 = vpop.f32.mrb[0].mxu0
  %v750 = vpop.f32.mrb[0].mxu0
  %751 = vdwg.mxu0
  %v752 = vmul.f32 %v747, 0.5
  %v753 = vsel %vm59, %v747, %v752
  %v754 = vtanh.pop %v753
  %v755 = vmul.f32 %v754, 0.5
  %v756 = vadd.f32 %v755, 0.5
  %v757 = vsel %vm59, %v754, %v756
  %758 = vrot.lane.b32.xlu0 %v757, 32
  %v759 = vpop.permute.xlu0 %758
  %760 = vrot.lane.b32.xlu0 %v757, 64
  %v761 = vpop.permute.xlu0 %760
  %762 = vrot.lane.b32.xlu0 %v757, 96
  %v763 = vpop.permute.xlu0 %762
  %v764 = vmul.f32 %v761, %v643
  %v765 = vmul.f32 %v759, %v763
  %v766 = vadd.f32 %v764, %v765
  %v767 = vtanh.pop %v766
  %v768 = vmul.f32 %v757, %v767
  %s769 = scalar_lea.vmem %s0, 10
  %v770 = vld [vmem:[%s769] sm:$0x3]
  %v771 = vpack.c.bf16 %v706, %v706
  %772 = vmatprep.subr.bf16.mxu0 0
  %773 = vmatpush1.bf16.msra.mxu0 %v94
  %774 = vmatprep.subr.bf16.mxu0 0
  %775 = vmatpush1.bf16.msra.mxu0 %v95
  %776 = vmatprep.subr.bf16.mxu0 0
  %777 = vmatpush1.bf16.msra.mxu0 %v96
  %778 = vmatprep.subr.bf16.mxu0 0
  %779 = vmatpush1.bf16.msra.mxu0 %v97
  %780 = vmatprep.subr.bf16.mxu0 0
  %781 = vmatpush1.bf16.msra.mxu0 %v98
  %782 = vmatprep.subr.bf16.mxu0 0
  %783 = vmatpush1.bf16.msra.mxu0 %v99
  %784 = vmatprep.subr.bf16.mxu0 0
  %785 = vmatpush1.bf16.msra.mxu0 %v100
  %786 = vmatprep.subr.bf16.mxu0 0
  %787 = vmatpush1.bf16.msra.mxu0 %v101
  %788 = vmatprep.subr.bf16.mxu0 0
  %789 = vmatpush1.bf16.msra.mxu0 0
  %790 = vmatprep.subr.bf16.mxu0 0
  %791 = vmatpush1.bf16.msra.mxu0 0
  %792 = vmatprep.subr.bf16.mxu0 0
  %793 = vmatpush1.bf16.msra.mxu0 0
  %794 = vmatprep.subr.bf16.mxu0 0
  %795 = vmatpush1.bf16.msra.mxu0 0
  %796 = vmatprep.subr.bf16.mxu0 0
  %797 = vmatpush1.bf16.msra.mxu0 0
  %798 = vmatprep.subr.bf16.mxu0 0
  %799 = vmatpush1.bf16.msra.mxu0 0
  %800 = vmatprep.subr.bf16.mxu0 0
  %801 = vmatpush1.bf16.msra.mxu0 0
  %802 = vmatprep.subr.bf16.mxu0 0
  %803 = vmatpush1.bf16.msra.mxu0 0
  %804 = vmatprep.mubr.bf16.mxu0 0
  %805 = vmatmul.mubr.bf16.gmra.mrb[0].mxu0 %v771
  %v806 = vpop.f32.mrb[0].mxu0
  %v807 = vadd.f32 0.0, %v806
  %v808 = vpop.f32.mrb[0].mxu0
  %v809 = vpop.f32.mrb[0].mxu0
  %v810 = vpop.f32.mrb[0].mxu0
  %811 = vdwg.mxu0
  %v812 = vadd.f32 %v770, %v807
  %v813 = vmul.f32 %v812, 0.5
  %v814 = vsel %vm59, %v812, %v813
  %v815 = vtanh.pop %v814
  %v816 = vmul.f32 %v815, 0.5
  %v817 = vadd.f32 %v816, 0.5
  %v818 = vsel %vm59, %v815, %v817
  %819 = vrot.lane.b32.xlu0 %v818, 32
  %v820 = vpop.permute.xlu0 %819
  %821 = vrot.lane.b32.xlu0 %v818, 64
  %v822 = vpop.permute.xlu0 %821
  %823 = vrot.lane.b32.xlu0 %v818, 96
  %v824 = vpop.permute.xlu0 %823
  %v825 = vmul.f32 %v822, %v704
  %v826 = vmul.f32 %v820, %v824
  %v827 = vadd.f32 %v825, %v826
  %v828 = vtanh.pop %v827
  %v829 = vmul.f32 %v818, %v828
  %v830 = vsel %vm60, %v768, 0.0
  %831 = vrot.lane.b32.xlu0 %v830, 32
  %v832 = vpop.permute.xlu0 %831
  %v833 = vsel %vm60, %v829, %v832
  %v834 = vpack.c.bf16 %v833, %v833
  %835 = vmatprep.subr.bf16.mxu0 0
  %836 = vmatpush1.bf16.msra.mxu0 %v204
  %837 = vmatprep.subr.bf16.mxu0 0
  %838 = vmatpush1.bf16.msra.mxu0 %v205
  %839 = vmatprep.subr.bf16.mxu0 0
  %840 = vmatpush1.bf16.msra.mxu0 %v206
  %841 = vmatprep.subr.bf16.mxu0 0
  %842 = vmatpush1.bf16.msra.mxu0 %v207
  %843 = vmatprep.subr.bf16.mxu0 0
  %844 = vmatpush1.bf16.msra.mxu0 %v208
  %845 = vmatprep.subr.bf16.mxu0 0
  %846 = vmatpush1.bf16.msra.mxu0 %v209
  %847 = vmatprep.subr.bf16.mxu0 0
  %848 = vmatpush1.bf16.msra.mxu0 %v210
  %849 = vmatprep.subr.bf16.mxu0 0
  %850 = vmatpush1.bf16.msra.mxu0 %v211
  %851 = vmatprep.subr.bf16.mxu0 0
  %852 = vmatpush1.bf16.msra.mxu0 0
  %853 = vmatprep.subr.bf16.mxu0 0
  %854 = vmatpush1.bf16.msra.mxu0 0
  %855 = vmatprep.subr.bf16.mxu0 0
  %856 = vmatpush1.bf16.msra.mxu0 0
  %857 = vmatprep.subr.bf16.mxu0 0
  %858 = vmatpush1.bf16.msra.mxu0 0
  %859 = vmatprep.subr.bf16.mxu0 0
  %860 = vmatpush1.bf16.msra.mxu0 0
  %861 = vmatprep.subr.bf16.mxu0 0
  %862 = vmatpush1.bf16.msra.mxu0 0
  %863 = vmatprep.subr.bf16.mxu0 0
  %864 = vmatpush1.bf16.msra.mxu0 0
  %865 = vmatprep.subr.bf16.mxu0 0
  %866 = vmatpush1.bf16.msra.mxu0 0
  %867 = vmatprep.mubr.bf16.mxu0 0
  %868 = vmatmul.mubr.bf16.gmra.mrb[0].mxu0 %v834
  %v869 = vpop.f32.mrb[0].mxu0
  %v870 = vadd.f32 %v55, %v869
  %v871 = vpop.f32.mrb[0].mxu0
  %v872 = vpop.f32.mrb[0].mxu0
  %v873 = vpop.f32.mrb[0].mxu0
  %874 = vdwg.mxu0
  %v875 = vmul.f32 %v870, 0.5
  %v876 = vsel %vm59, %v870, %v875
  %v877 = vtanh.pop %v876
  %v878 = vmul.f32 %v877, 0.5
  %v879 = vadd.f32 %v878, 0.5
  %v880 = vsel %vm59, %v877, %v879
  %881 = vrot.lane.b32.xlu0 %v880, 32
  %v882 = vpop.permute.xlu0 %881
  %883 = vrot.lane.b32.xlu0 %v880, 64
  %v884 = vpop.permute.xlu0 %883
  %885 = vrot.lane.b32.xlu0 %v880, 96
  %v886 = vpop.permute.xlu0 %885
  %v887 = vmul.f32 %v884, %v766
  %v888 = vmul.f32 %v882, %v886
  %v889 = vadd.f32 %v887, %v888
  %v890 = vtanh.pop %v889
  %v891 = vmul.f32 %v880, %v890
  %s892 = scalar_lea.vmem %s0, 12
  %v893 = vld [vmem:[%s892] sm:$0x3]
  %v894 = vpack.c.bf16 %v829, %v829
  %895 = vmatprep.subr.bf16.mxu0 0
  %896 = vmatpush1.bf16.msra.mxu0 %v94
  %897 = vmatprep.subr.bf16.mxu0 0
  %898 = vmatpush1.bf16.msra.mxu0 %v95
  %899 = vmatprep.subr.bf16.mxu0 0
  %900 = vmatpush1.bf16.msra.mxu0 %v96
  %901 = vmatprep.subr.bf16.mxu0 0
  %902 = vmatpush1.bf16.msra.mxu0 %v97
  %903 = vmatprep.subr.bf16.mxu0 0
  %904 = vmatpush1.bf16.msra.mxu0 %v98
  %905 = vmatprep.subr.bf16.mxu0 0
  %906 = vmatpush1.bf16.msra.mxu0 %v99
  %907 = vmatprep.subr.bf16.mxu0 0
  %908 = vmatpush1.bf16.msra.mxu0 %v100
  %909 = vmatprep.subr.bf16.mxu0 0
  %910 = vmatpush1.bf16.msra.mxu0 %v101
  %911 = vmatprep.subr.bf16.mxu0 0
  %912 = vmatpush1.bf16.msra.mxu0 0
  %913 = vmatprep.subr.bf16.mxu0 0
  %914 = vmatpush1.bf16.msra.mxu0 0
  %915 = vmatprep.subr.bf16.mxu0 0
  %916 = vmatpush1.bf16.msra.mxu0 0
  %917 = vmatprep.subr.bf16.mxu0 0
  %918 = vmatpush1.bf16.msra.mxu0 0
  %919 = vmatprep.subr.bf16.mxu0 0
  %920 = vmatpush1.bf16.msra.mxu0 0
  %921 = vmatprep.subr.bf16.mxu0 0
  %922 = vmatpush1.bf16.msra.mxu0 0
  %923 = vmatprep.subr.bf16.mxu0 0
  %924 = vmatpush1.bf16.msra.mxu0 0
  %925 = vmatprep.subr.bf16.mxu0 0
  %926 = vmatpush1.bf16.msra.mxu0 0
  %927 = vmatprep.mubr.bf16.mxu0 0
  %928 = vmatmul.mubr.bf16.gmra.mrb[0].mxu0 %v894
  %v929 = vpop.f32.mrb[0].mxu0
  %v930 = vadd.f32 0.0, %v929
  %v931 = vpop.f32.mrb[0].mxu0
  %v932 = vpop.f32.mrb[0].mxu0
  %v933 = vpop.f32.mrb[0].mxu0
  %934 = vdwg.mxu0
  %v935 = vadd.f32 %v893, %v930
  %v936 = vmul.f32 %v935, 0.5
  %v937 = vsel %vm59, %v935, %v936
  %v938 = vtanh.pop %v937
  %v939 = vmul.f32 %v938, 0.5
  %v940 = vadd.f32 %v939, 0.5
  %v941 = vsel %vm59, %v938, %v940
  %942 = vrot.lane.b32.xlu0 %v941, 32
  %v943 = vpop.permute.xlu0 %942
  %944 = vrot.lane.b32.xlu0 %v941, 64
  %v945 = vpop.permute.xlu0 %944
  %946 = vrot.lane.b32.xlu0 %v941, 96
  %v947 = vpop.permute.xlu0 %946
  %v948 = vmul.f32 %v945, %v827
  %v949 = vmul.f32 %v943, %v947
  %v950 = vadd.f32 %v948, %v949
  %v951 = vtanh.pop %v950
  %v952 = vmul.f32 %v941, %v951
  %v953 = vsel %vm60, %v891, 0.0
  %954 = vrot.lane.b32.xlu0 %v953, 32
  %v955 = vpop.permute.xlu0 %954
  %v956 = vsel %vm60, %v952, %v955
  %v957 = vpack.c.bf16 %v956, %v956
  %958 = vmatprep.subr.bf16.mxu0 0
  %959 = vmatpush1.bf16.msra.mxu0 %v204
  %960 = vmatprep.subr.bf16.mxu0 0
  %961 = vmatpush1.bf16.msra.mxu0 %v205
  %962 = vmatprep.subr.bf16.mxu0 0
  %963 = vmatpush1.bf16.msra.mxu0 %v206
  %964 = vmatprep.subr.bf16.mxu0 0
  %965 = vmatpush1.bf16.msra.mxu0 %v207
  %966 = vmatprep.subr.bf16.mxu0 0
  %967 = vmatpush1.bf16.msra.mxu0 %v208
  %968 = vmatprep.subr.bf16.mxu0 0
  %969 = vmatpush1.bf16.msra.mxu0 %v209
  %970 = vmatprep.subr.bf16.mxu0 0
  %971 = vmatpush1.bf16.msra.mxu0 %v210
  %972 = vmatprep.subr.bf16.mxu0 0
  %973 = vmatpush1.bf16.msra.mxu0 %v211
  %974 = vmatprep.subr.bf16.mxu0 0
  %975 = vmatpush1.bf16.msra.mxu0 0
  %976 = vmatprep.subr.bf16.mxu0 0
  %977 = vmatpush1.bf16.msra.mxu0 0
  %978 = vmatprep.subr.bf16.mxu0 0
  %979 = vmatpush1.bf16.msra.mxu0 0
  %980 = vmatprep.subr.bf16.mxu0 0
  %981 = vmatpush1.bf16.msra.mxu0 0
  %982 = vmatprep.subr.bf16.mxu0 0
  %983 = vmatpush1.bf16.msra.mxu0 0
  %984 = vmatprep.subr.bf16.mxu0 0
  %985 = vmatpush1.bf16.msra.mxu0 0
  %986 = vmatprep.subr.bf16.mxu0 0
  %987 = vmatpush1.bf16.msra.mxu0 0
  %988 = vmatprep.subr.bf16.mxu0 0
  %989 = vmatpush1.bf16.msra.mxu0 0
  %990 = vmatprep.mubr.bf16.mxu0 0
  %991 = vmatmul.mubr.bf16.gmra.mrb[0].mxu0 %v957
  %v992 = vpop.f32.mrb[0].mxu0
  %v993 = vadd.f32 %v55, %v992
  %v994 = vpop.f32.mrb[0].mxu0
  %v995 = vpop.f32.mrb[0].mxu0
  %v996 = vpop.f32.mrb[0].mxu0
  %997 = vdwg.mxu0
  %v998 = vmul.f32 %v993, 0.5
  %v999 = vsel %vm59, %v993, %v998
  %v1000 = vtanh.pop %v999
  %v1001 = vmul.f32 %v1000, 0.5
  %v1002 = vadd.f32 %v1001, 0.5
  %v1003 = vsel %vm59, %v1000, %v1002
  %1004 = vrot.lane.b32.xlu0 %v1003, 32
  %v1005 = vpop.permute.xlu0 %1004
  %1006 = vrot.lane.b32.xlu0 %v1003, 64
  %v1007 = vpop.permute.xlu0 %1006
  %1008 = vrot.lane.b32.xlu0 %v1003, 96
  %v1009 = vpop.permute.xlu0 %1008
  %v1010 = vmul.f32 %v1007, %v889
  %v1011 = vmul.f32 %v1005, %v1009
  %v1012 = vadd.f32 %v1010, %v1011
  %v1013 = vtanh.pop %v1012
  %v1014 = vmul.f32 %v1003, %v1013
  %s1015 = scalar_lea.vmem %s0, 14
  %v1016 = vld [vmem:[%s1015] sm:$0x3]
  %v1017 = vpack.c.bf16 %v952, %v952
  %1018 = vmatprep.subr.bf16.mxu0 0
  %1019 = vmatpush1.bf16.msra.mxu0 %v94
  %1020 = vmatprep.subr.bf16.mxu0 0
  %1021 = vmatpush1.bf16.msra.mxu0 %v95
  %1022 = vmatprep.subr.bf16.mxu0 0
  %1023 = vmatpush1.bf16.msra.mxu0 %v96
  %1024 = vmatprep.subr.bf16.mxu0 0
  %1025 = vmatpush1.bf16.msra.mxu0 %v97
  %1026 = vmatprep.subr.bf16.mxu0 0
  %1027 = vmatpush1.bf16.msra.mxu0 %v98
  %1028 = vmatprep.subr.bf16.mxu0 0
  %1029 = vmatpush1.bf16.msra.mxu0 %v99
  %1030 = vmatprep.subr.bf16.mxu0 0
  %1031 = vmatpush1.bf16.msra.mxu0 %v100
  %1032 = vmatprep.subr.bf16.mxu0 0
  %1033 = vmatpush1.bf16.msra.mxu0 %v101
  %1034 = vmatprep.subr.bf16.mxu0 0
  %1035 = vmatpush1.bf16.msra.mxu0 0
  %1036 = vmatprep.subr.bf16.mxu0 0
  %1037 = vmatpush1.bf16.msra.mxu0 0
  %1038 = vmatprep.subr.bf16.mxu0 0
  %1039 = vmatpush1.bf16.msra.mxu0 0
  %1040 = vmatprep.subr.bf16.mxu0 0
  %1041 = vmatpush1.bf16.msra.mxu0 0
  %1042 = vmatprep.subr.bf16.mxu0 0
  %1043 = vmatpush1.bf16.msra.mxu0 0
  %1044 = vmatprep.subr.bf16.mxu0 0
  %1045 = vmatpush1.bf16.msra.mxu0 0
  %1046 = vmatprep.subr.bf16.mxu0 0
  %1047 = vmatpush1.bf16.msra.mxu0 0
  %1048 = vmatprep.subr.bf16.mxu0 0
  %1049 = vmatpush1.bf16.msra.mxu0 0
  %1050 = vmatprep.mubr.bf16.mxu0 0
  %1051 = vmatmul.mubr.bf16.gmra.mrb[0].mxu0 %v1017
  %v1052 = vpop.f32.mrb[0].mxu0
  %v1053 = vadd.f32 0.0, %v1052
  %v1054 = vpop.f32.mrb[0].mxu0
  %v1055 = vpop.f32.mrb[0].mxu0
  %v1056 = vpop.f32.mrb[0].mxu0
  %1057 = vdwg.mxu0
  %v1058 = vadd.f32 %v1016, %v1053
  %v1059 = vmul.f32 %v1058, 0.5
  %v1060 = vsel %vm59, %v1058, %v1059
  %v1061 = vtanh.pop %v1060
  %v1062 = vmul.f32 %v1061, 0.5
  %v1063 = vadd.f32 %v1062, 0.5
  %v1064 = vsel %vm59, %v1061, %v1063
  %1065 = vrot.lane.b32.xlu0 %v1064, 32
  %v1066 = vpop.permute.xlu0 %1065
  %1067 = vrot.lane.b32.xlu0 %v1064, 64
  %v1068 = vpop.permute.xlu0 %1067
  %1069 = vrot.lane.b32.xlu0 %v1064, 96
  %v1070 = vpop.permute.xlu0 %1069
  %v1071 = vmul.f32 %v1068, %v950
  %v1072 = vmul.f32 %v1066, %v1070
  %v1073 = vadd.f32 %v1071, %v1072
  %v1074 = vtanh.pop %v1073
  %v1075 = vmul.f32 %v1064, %v1074
  %v1076 = vsel %vm60, %v1014, 0.0
  %1077 = vrot.lane.b32.xlu0 %v1076, 32
  %v1078 = vpop.permute.xlu0 %1077
  %v1079 = vsel %vm60, %v1075, %v1078
  %v1080 = vpack.c.bf16 %v1079, %v1079
  %1081 = vmatprep.subr.bf16.mxu0 0
  %1082 = vmatpush1.bf16.msra.mxu0 %v204
  %1083 = vmatprep.subr.bf16.mxu0 0
  %1084 = vmatpush1.bf16.msra.mxu0 %v205
  %1085 = vmatprep.subr.bf16.mxu0 0
  %1086 = vmatpush1.bf16.msra.mxu0 %v206
  %1087 = vmatprep.subr.bf16.mxu0 0
  %1088 = vmatpush1.bf16.msra.mxu0 %v207
  %1089 = vmatprep.subr.bf16.mxu0 0
  %1090 = vmatpush1.bf16.msra.mxu0 %v208
  %1091 = vmatprep.subr.bf16.mxu0 0
  %1092 = vmatpush1.bf16.msra.mxu0 %v209
  %1093 = vmatprep.subr.bf16.mxu0 0
  %1094 = vmatpush1.bf16.msra.mxu0 %v210
  %1095 = vmatprep.subr.bf16.mxu0 0
  %1096 = vmatpush1.bf16.msra.mxu0 %v211
  %1097 = vmatprep.subr.bf16.mxu0 0
  %1098 = vmatpush1.bf16.msra.mxu0 0
  %1099 = vmatprep.subr.bf16.mxu0 0
  %1100 = vmatpush1.bf16.msra.mxu0 0
  %1101 = vmatprep.subr.bf16.mxu0 0
  %1102 = vmatpush1.bf16.msra.mxu0 0
  %1103 = vmatprep.subr.bf16.mxu0 0
  %1104 = vmatpush1.bf16.msra.mxu0 0
  %1105 = vmatprep.subr.bf16.mxu0 0
  %1106 = vmatpush1.bf16.msra.mxu0 0
  %1107 = vmatprep.subr.bf16.mxu0 0
  %1108 = vmatpush1.bf16.msra.mxu0 0
  %1109 = vmatprep.subr.bf16.mxu0 0
  %1110 = vmatpush1.bf16.msra.mxu0 0
  %1111 = vmatprep.subr.bf16.mxu0 0
  %1112 = vmatpush1.bf16.msra.mxu0 0
  %1113 = vmatprep.mubr.bf16.mxu0 0
  %1114 = vmatmul.mubr.bf16.gmra.mrb[0].mxu0 %v1080
  %v1115 = vpop.f32.mrb[0].mxu0
  %v1116 = vadd.f32 %v55, %v1115
  %v1117 = vpop.f32.mrb[0].mxu0
  %v1118 = vpop.f32.mrb[0].mxu0
  %v1119 = vpop.f32.mrb[0].mxu0
  %1120 = vdwg.mxu0
  %v1121 = vmul.f32 %v1116, 0.5
  %v1122 = vsel %vm59, %v1116, %v1121
  %v1123 = vtanh.pop %v1122
  %v1124 = vmul.f32 %v1123, 0.5
  %v1125 = vadd.f32 %v1124, 0.5
  %v1126 = vsel %vm59, %v1123, %v1125
  %1127 = vrot.lane.b32.xlu0 %v1126, 32
  %v1128 = vpop.permute.xlu0 %1127
  %1129 = vrot.lane.b32.xlu0 %v1126, 64
  %v1130 = vpop.permute.xlu0 %1129
  %1131 = vrot.lane.b32.xlu0 %v1126, 96
  %v1132 = vpop.permute.xlu0 %1131
  %v1133 = vmul.f32 %v1130, %v1012
  %v1134 = vmul.f32 %v1128, %v1132
  %v1135 = vadd.f32 %v1133, %v1134
  %v1136 = vtanh.pop %v1135
  %v1137 = vmul.f32 %v1126, %v1136
  %1138 = vst [vmem:[%s4] sm:$0x3] %v1137
  // Predicated region
  $region18: #{lstm_forward.1} parent=0 // pred_check
    _
  $region19: #{lstm_forward.1} parent=0 // pred_check_branch
    %1140 = sbr.rel (0) target = $region21
  $region20: #{lstm_forward.1} parent=0 // pred_region
    _
  $region21: #{lstm_forward.1} parent=0 // pred_fallthru
    _
  // Predicated region
  $region22: #{lstm_forward.1} parent=0 // pred_check
    _
  $region23: #{lstm_forward.1} parent=0 // pred_check_branch
    %1142 = sbr.rel (0) target = $region25
  $region24: #{lstm_forward.1} parent=0 // pred_region
    _
  $region25: #{lstm_forward.1} parent=0 // pred_fallthru
    _

</llo_original>
